<compile_context>
chip_gen: v6e
topology: v6e:2x2x1
jax: 0.10.0
libtpu: 0.0.40
codegen_flags: <defaults>
</compile_context>

<pallas_src>
import jax
import jax.numpy as jnp
from jax import lax
from jax.experimental import pallas as pl
from jax.experimental.pallas import tpu as pltpu

HIDDEN = 32          # hidden_size
LAYERS = 2           # num_layers
USE_BF16_MXU = True  # bf16 MXU operands, f32 accumulation (keep True on v5e)


def lstm_net_kernel(x_ref, wih0_ref, whh0_ref, b0_ref,
                    wih1_ref, whh1_ref, b1_ref, wfc_ref, bfc_ref, out_ref):
    """Wavefront 2-layer LSTM over time, then fc on the last hidden state.

    x_ref   : (B, T)   x[b, t] (input_size == 1, squeezed in the wrapper)
    wih0_ref: (1, 4H)  layer-0 input->gates (transposed)
    whh0_ref: (H, 4H)  layer-0 hidden->gates (transposed)
    b0_ref  : (1, 4H)  layer-0 combined bias (b_ih + b_hh)
    wih1_ref: (H, 4H)  layer-1 input->gates (transposed)
    whh1_ref: (H, 4H)  layer-1 hidden->gates (transposed)
    b1_ref  : (1, 4H)  layer-1 combined bias
    wfc_ref : (1, H)   fc weight (PyTorch layout)
    bfc_ref : (1, 1)   fc bias
    out_ref : (B, 1)
    """
    B, T = x_ref.shape            # static Python ints
    H = HIDDEN
    G = 4 * H
    mxu = jnp.bfloat16 if USE_BF16_MXU else jnp.float32

    # ---- hoisted weights: fused recurrent weight [whh0 | wih1] -----------
    w01 = jnp.concatenate([whh0_ref[...], wih1_ref[...]], axis=1).astype(mxu)
    wih1_b = wih1_ref[...].astype(mxu)            # (H, 4H) for the last step
    whh1_b = whh1_ref[...].astype(mxu)            # (H, 4H)

    # ---- hoisted broadcasts (JAX does not CSE broadcast_in_dim) ----------
    wih0_b = jnp.broadcast_to(wih0_ref[...], (B, G))
    b0_b = jnp.broadcast_to(b0_ref[...], (B, G))
    b1_b = jnp.broadcast_to(b1_ref[...], (B, G))

    # ---- single-tanh gate activation constants ---------------------------
    # sigmoid(z) = 0.5*tanh(z/2) + 0.5  -> scale 0.5 on i/f/o lanes, 1.0 on g.
    lane = lax.broadcasted_iota(jnp.int32, (B, G), 1)
    is_g = (lane >= 2 * H) & (lane < 3 * H)
    scl = jnp.where(is_g, 1.0, 0.5).astype(jnp.float32)   # pre & post scale
    off = jnp.where(is_g, 0.0, 0.5).astype(jnp.float32)   # post offset

    def activate(z):
        # one full-width tanh + fused scale/offset -> [sig(i)|sig(f)|tanh(g)|sig(o)]
        return jnp.tanh(z * scl) * scl + off

    def cell(act, c):
        i = act[:, 0 * H:1 * H]
        f = act[:, 1 * H:2 * H]
        g = act[:, 2 * H:3 * H]
        o = act[:, 3 * H:4 * H]
        c_new = f * c + i * g
        return o * jnp.tanh(c_new), c_new

    def cell0(act):               # peeled first step: h_prev = c_prev = 0
        i = act[:, 0 * H:1 * H]
        g = act[:, 2 * H:3 * H]
        o = act[:, 3 * H:4 * H]
        c_new = i * g
        return o * jnp.tanh(c_new), c_new

    def dot_(a, w):
        return jnp.dot(a.astype(mxu), w, preferred_element_type=jnp.float32)

    # ---- layer-0 input projections for every timestep (off the chain) ----
    x_bt = x_ref[...]                                   # (B, T), single load
    in0 = [x_bt[:, t:t + 1] * wih0_b + b0_b for t in range(T)]   # T x (B, 4H)

    # ---- wavefront 0: layer-0 step 0 (zero state, no matmul) -------------
    h0, c0 = cell0(activate(in0[0]))

    if T >= 2:
        # ---- wavefront 1: layer-0 step 1 + layer-1 step 0 ----------------
        m0 = dot_(h0, w01)                              # h0_0 @ [whh0 | wih1]
        h0, c0 = cell(activate(in0[1] + m0[:, :G]), c0)
        h1, c1 = cell0(activate(m0[:, G:] + b1_b))      # h1_{-1} = 0

        # ---- wavefronts 2..T-1: one step of each layer per wavefront -----
        for w in range(2, T):                           # statically unrolled
            m0 = dot_(h0, w01)                          # h0_{w-1} @ [whh0|wih1]
            m1 = dot_(h1, whh1_b)                       # h1_{w-2} @ whh1 (slack)
            g0 = in0[w] + m0[:, :G]
            g1 = m0[:, G:] + b1_b + m1
            h0, c0 = cell(activate(g0), c0)
            h1, c1 = cell(activate(g1), c1)

        # ---- final wavefront: layer-1 step T-1 ----------------------------
        g1 = dot_(h0, wih1_b) + b1_b + dot_(h1, whh1_b)
        h1, c1 = cell(activate(g1), c1)
    else:
        # T == 1: single layer-1 step with zero initial state
        h1, c1 = cell0(activate(dot_(h0, wih1_b) + b1_b))

    # ---- fc on the last top-layer hidden state: VPU mul + lane reduce ----
    wfc_b = jnp.broadcast_to(wfc_ref[...], (B, H))
    out_ref[...] = (jnp.sum(h1 * wfc_b, axis=-1, keepdims=True)
                    + bfc_ref[...])


def net_forward(x, params):
    """x: (B, T, 1) float32 -> (B, 1) float32 (same as PyTorch Net.forward)."""
    B, T, _ = x.shape
    x_bt = x.reshape(B, T)      # squeeze input_size=1; no transpose HLO needed
    vmem = pl.BlockSpec(memory_space=pltpu.MemorySpace.VMEM)
    return pl.pallas_call(
        lstm_net_kernel,
        out_shape=jax.ShapeDtypeStruct((B, 1), jnp.float32),
        in_specs=[vmem] * 9,
        out_specs=vmem,
    )(x_bt,
      params["wih0_t"], params["whh0_t"], params["b0"],
      params["wih1_t"], params["whh1_t"], params["b1"],
      params["wfc"], params["bfc"])


def init_params(key):
    """Deterministic init matching PyTorch shapes (U(-1/sqrt(H), 1/sqrt(H)))."""
    H = HIDDEN
    ks = jax.random.split(key, 10)
    s = 1.0 / jnp.sqrt(jnp.float32(H))

    def u(k, shape):
        return jax.random.uniform(k, shape, jnp.float32, -s, s)

    wih0 = u(ks[0], (4 * H, 1))     # weight_ih_l0
    whh0 = u(ks[1], (4 * H, H))     # weight_hh_l0
    bih0 = u(ks[2], (4 * H,))
    bhh0 = u(ks[3], (4 * H,))
    wih1 = u(ks[4], (4 * H, H))     # weight_ih_l1
    whh1 = u(ks[5], (4 * H, H))     # weight_hh_l1
    bih1 = u(ks[6], (4 * H,))
    bhh1 = u(ks[7], (4 * H,))
    wfc = u(ks[8], (1, H))          # fc.weight
    bfc = u(ks[9], (1,))            # fc.bias
    return dict(
        wih0_t=wih0.T, whh0_t=whh0.T, b0=(bih0 + bhh0).reshape(1, 4 * H),
        wih1_t=wih1.T, whh1_t=whh1.T, b1=(bih1 + bhh1).reshape(1, 4 * H),
        wfc=wfc, bfc=bfc.reshape(1, 1),
    )


def net_forward_ref(x, params, mxu_dtype=jnp.float32):
    """Pure-JAX reference of the same 2-layer LSTM + fc (PyTorch semantics).

    `mxu_dtype` mirrors the kernel's matmul-operand precision so the kernel
    can be checked tightly against a matching-precision reference.
    """
    B, T, _ = x.shape
    H = HIDDEN

    def mm(a, b):
        return jnp.dot(a.astype(mxu_dtype), b.astype(mxu_dtype),
                       preferred_element_type=jnp.float32)

    def cell(g, c):
        i = jax.nn.sigmoid(g[:, 0 * H:1 * H])
        f = jax.nn.sigmoid(g[:, 1 * H:2 * H])
        gg = jnp.tanh(g[:, 2 * H:3 * H])
        o = jax.nn.sigmoid(g[:, 3 * H:4 * H])
        c = f * c + i * gg
        h = o * jnp.tanh(c)
        return h, c

    h0 = c0 = h1 = c1 = jnp.zeros((B, H), jnp.float32)
    for t in range(T):
        x_t = x[:, t, :]                                        # (B, 1)
        g0 = x_t * params["wih0_t"] + params["b0"] + mm(h0, params["whh0_t"])
        h0, c0 = cell(g0, c0)
        g1 = mm(h0, params["wih1_t"]) + params["b1"] + mm(h1, params["whh1_t"])
        h1, c1 = cell(g1, c1)
    return (jnp.dot(h1, params["wfc"].T, preferred_element_type=jnp.float32)
            + params["bfc"])


if __name__ == "__main__":
    key = jax.random.PRNGKey(0)
    k_x, k_p = jax.random.split(key)

    # B=8 fills all eight f32 sublanes (perf review); T=8 timesteps.
    B, T = 8, 8
    x = jax.random.normal(k_x, (B, T, 1), jnp.float32)
    params = init_params(k_p)

    out = jax.block_until_ready(jax.jit(net_forward)(x, params))
    assert out.shape == (B, 1)

    # tight check vs a reference with matching matmul-operand precision
    mxu_dtype = jnp.bfloat16 if USE_BF16_MXU else jnp.float32
    ref_match = net_forward_ref(x, params, mxu_dtype)
    assert jnp.allclose(out, ref_match, rtol=2e-3, atol=2e-3), (
        jnp.abs(out - ref_match).max())

    # loose sanity check vs the pure-f32 (PyTorch-semantics) reference
    # (bf16 rounding of the recurrent state compounds over T steps)
    ref_f32 = net_forward_ref(x, params, jnp.float32)
    assert jnp.allclose(out, ref_f32, rtol=1e-1, atol=1e-1), (
        jnp.abs(out - ref_f32).max())

    print("KERNEL_OK")
</pallas_src>

<mosaic_0001>
module attributes {stable_mosaic.version = 11 : i64} {
  func.func @lstm_net_kernel(%arg0: memref<8x8xf32, #tpu.memory_space<vmem>>, %arg1: memref<1x128xf32, #tpu.memory_space<vmem>>, %arg2: memref<32x128xf32, #tpu.memory_space<vmem>>, %arg3: memref<1x128xf32, #tpu.memory_space<vmem>>, %arg4: memref<32x128xf32, #tpu.memory_space<vmem>>, %arg5: memref<32x128xf32, #tpu.memory_space<vmem>>, %arg6: memref<1x128xf32, #tpu.memory_space<vmem>>, %arg7: memref<1x32xf32, #tpu.memory_space<vmem>>, %arg8: memref<1x1xf32, #tpu.memory_space<vmem>>, %arg9: memref<8x1xf32, #tpu.memory_space<vmem>>) attributes {dimension_semantics = [], scalar_prefetch = 0 : i64, scratch_operands = 0 : i64, tpu.core_type = #tpu.core_type<tc>} {
    %c0 = arith.constant 0 : index
    %c0_0 = arith.constant 0 : index
    %0 = vector.load %arg2[%c0, %c0_0] : memref<32x128xf32, #tpu.memory_space<vmem>>, vector<32x128xf32>
    %c0_1 = arith.constant 0 : index
    %c0_2 = arith.constant 0 : index
    %1 = vector.load %arg4[%c0_1, %c0_2] : memref<32x128xf32, #tpu.memory_space<vmem>>, vector<32x128xf32>
    %2 = tpu.concatenate %0, %1 in 1 : vector<32x128xf32>, vector<32x128xf32> -> vector<32x256xf32>
    %3 = arith.truncf %2 : vector<32x256xf32> to vector<32x256xbf16>
    %c0_3 = arith.constant 0 : index
    %c0_4 = arith.constant 0 : index
    %4 = vector.load %arg4[%c0_3, %c0_4] : memref<32x128xf32, #tpu.memory_space<vmem>>, vector<32x128xf32>
    %5 = arith.truncf %4 : vector<32x128xf32> to vector<32x128xbf16>
    %c0_5 = arith.constant 0 : index
    %c0_6 = arith.constant 0 : index
    %6 = vector.load %arg5[%c0_5, %c0_6] : memref<32x128xf32, #tpu.memory_space<vmem>>, vector<32x128xf32>
    %7 = arith.truncf %6 : vector<32x128xf32> to vector<32x128xbf16>
    %c0_7 = arith.constant 0 : index
    %c0_8 = arith.constant 0 : index
    %8 = vector.load %arg1[%c0_7, %c0_8] : memref<1x128xf32, #tpu.memory_space<vmem>>, vector<1x128xf32>
    %9 = vector.shape_cast %8 : vector<1x128xf32> to vector<1x128xf32>
    %10 = vector.broadcast %9 : vector<1x128xf32> to vector<8x128xf32>
    %c0_9 = arith.constant 0 : index
    %c0_10 = arith.constant 0 : index
    %11 = vector.load %arg3[%c0_9, %c0_10] : memref<1x128xf32, #tpu.memory_space<vmem>>, vector<1x128xf32>
    %12 = vector.shape_cast %11 : vector<1x128xf32> to vector<1x128xf32>
    %13 = vector.broadcast %12 : vector<1x128xf32> to vector<8x128xf32>
    %c0_11 = arith.constant 0 : index
    %c0_12 = arith.constant 0 : index
    %14 = vector.load %arg6[%c0_11, %c0_12] : memref<1x128xf32, #tpu.memory_space<vmem>>, vector<1x128xf32>
    %15 = vector.shape_cast %14 : vector<1x128xf32> to vector<1x128xf32>
    %16 = vector.broadcast %15 : vector<1x128xf32> to vector<8x128xf32>
    %17 = tpu.iota {dimensions = array<i32: 1>} : vector<8x128xi32>
    %c64_i32 = arith.constant 64 : i32
    %18 = vector.broadcast %c64_i32 : i32 to vector<8x128xi32>
    %19 = arith.cmpi sge, %17, %18 : vector<8x128xi32>
    %c96_i32 = arith.constant 96 : i32
    %20 = vector.broadcast %c96_i32 : i32 to vector<8x128xi32>
    %21 = arith.cmpi slt, %17, %20 : vector<8x128xi32>
    %22 = arith.andi %19, %21 : vector<8x128xi1>
    %cst = arith.constant 1.000000e+00 : f32
    %cst_13 = arith.constant 5.000000e-01 : f32
    %23 = vector.broadcast %cst : f32 to vector<8x128xf32>
    %24 = vector.broadcast %cst_13 : f32 to vector<8x128xf32>
    %25 = arith.select %22, %23, %24 : vector<8x128xi1>, vector<8x128xf32>
    %cst_14 = arith.constant 0.000000e+00 : f32
    %cst_15 = arith.constant 5.000000e-01 : f32
    %26 = vector.broadcast %cst_14 : f32 to vector<8x128xf32>
    %27 = vector.broadcast %cst_15 : f32 to vector<8x128xf32>
    %28 = arith.select %22, %26, %27 : vector<8x128xi1>, vector<8x128xf32>
    %c0_16 = arith.constant 0 : index
    %c0_17 = arith.constant 0 : index
    %29 = vector.load %arg0[%c0_16, %c0_17] : memref<8x8xf32, #tpu.memory_space<vmem>>, vector<8x8xf32>
    %30 = vector.extract_strided_slice %29 {offsets = [0, 0], sizes = [8, 1], strides = [1, 1]} : vector<8x8xf32> to vector<8x1xf32>
    %31 = vector.broadcast %30 : vector<8x1xf32> to vector<8x128xf32>
    %32 = arith.mulf %31, %10 : vector<8x128xf32>
    %33 = arith.addf %32, %13 : vector<8x128xf32>
    %34 = vector.extract_strided_slice %29 {offsets = [0, 1], sizes = [8, 1], strides = [1, 1]} : vector<8x8xf32> to vector<8x1xf32>
    %35 = vector.broadcast %34 : vector<8x1xf32> to vector<8x128xf32>
    %36 = arith.mulf %35, %10 : vector<8x128xf32>
    %37 = arith.addf %36, %13 : vector<8x128xf32>
    %38 = vector.extract_strided_slice %29 {offsets = [0, 2], sizes = [8, 1], strides = [1, 1]} : vector<8x8xf32> to vector<8x1xf32>
    %39 = vector.broadcast %38 : vector<8x1xf32> to vector<8x128xf32>
    %40 = arith.mulf %39, %10 : vector<8x128xf32>
    %41 = arith.addf %40, %13 : vector<8x128xf32>
    %42 = vector.extract_strided_slice %29 {offsets = [0, 3], sizes = [8, 1], strides = [1, 1]} : vector<8x8xf32> to vector<8x1xf32>
    %43 = vector.broadcast %42 : vector<8x1xf32> to vector<8x128xf32>
    %44 = arith.mulf %43, %10 : vector<8x128xf32>
    %45 = arith.addf %44, %13 : vector<8x128xf32>
    %46 = vector.extract_strided_slice %29 {offsets = [0, 4], sizes = [8, 1], strides = [1, 1]} : vector<8x8xf32> to vector<8x1xf32>
    %47 = vector.broadcast %46 : vector<8x1xf32> to vector<8x128xf32>
    %48 = arith.mulf %47, %10 : vector<8x128xf32>
    %49 = arith.addf %48, %13 : vector<8x128xf32>
    %50 = vector.extract_strided_slice %29 {offsets = [0, 5], sizes = [8, 1], strides = [1, 1]} : vector<8x8xf32> to vector<8x1xf32>
    %51 = vector.broadcast %50 : vector<8x1xf32> to vector<8x128xf32>
    %52 = arith.mulf %51, %10 : vector<8x128xf32>
    %53 = arith.addf %52, %13 : vector<8x128xf32>
    %54 = vector.extract_strided_slice %29 {offsets = [0, 6], sizes = [8, 1], strides = [1, 1]} : vector<8x8xf32> to vector<8x1xf32>
    %55 = vector.broadcast %54 : vector<8x1xf32> to vector<8x128xf32>
    %56 = arith.mulf %55, %10 : vector<8x128xf32>
    %57 = arith.addf %56, %13 : vector<8x128xf32>
    %58 = vector.extract_strided_slice %29 {offsets = [0, 7], sizes = [8, 1], strides = [1, 1]} : vector<8x8xf32> to vector<8x1xf32>
    %59 = vector.broadcast %58 : vector<8x1xf32> to vector<8x128xf32>
    %60 = arith.mulf %59, %10 : vector<8x128xf32>
    %61 = arith.addf %60, %13 : vector<8x128xf32>
    %62 = arith.mulf %33, %25 : vector<8x128xf32>
    %63 = math.tanh %62 : vector<8x128xf32>
    %64 = arith.mulf %63, %25 : vector<8x128xf32>
    %65 = arith.addf %64, %28 : vector<8x128xf32>
    %66 = vector.extract_strided_slice %65 {offsets = [0, 0], sizes = [8, 32], strides = [1, 1]} : vector<8x128xf32> to vector<8x32xf32>
    %67 = vector.extract_strided_slice %65 {offsets = [0, 64], sizes = [8, 32], strides = [1, 1]} : vector<8x128xf32> to vector<8x32xf32>
    %68 = vector.extract_strided_slice %65 {offsets = [0, 96], sizes = [8, 32], strides = [1, 1]} : vector<8x128xf32> to vector<8x32xf32>
    %69 = arith.mulf %66, %67 : vector<8x32xf32>
    %70 = math.tanh %69 : vector<8x32xf32>
    %71 = arith.mulf %68, %70 : vector<8x32xf32>
    %72 = arith.truncf %71 : vector<8x32xf32> to vector<8x32xbf16>
    %cst_18 = arith.constant dense<0.000000e+00> : vector<8x256xf32>
    %73 = tpu.matmul %72, %3, %cst_18 {dimension_numbers = #tpu.dot_dimension_numbers<[1], [0], [0], [1], [0, 0, 1, 1], [], []>} : vector<8x32xbf16>, vector<32x256xbf16>, vector<8x256xf32> -> vector<8x256xf32>
    %74 = vector.extract_strided_slice %73 {offsets = [0, 0], sizes = [8, 128], strides = [1, 1]} : vector<8x256xf32> to vector<8x128xf32>
    %75 = arith.addf %37, %74 : vector<8x128xf32>
    %76 = arith.mulf %75, %25 : vector<8x128xf32>
    %77 = math.tanh %76 : vector<8x128xf32>
    %78 = arith.mulf %77, %25 : vector<8x128xf32>
    %79 = arith.addf %78, %28 : vector<8x128xf32>
    %80 = vector.extract_strided_slice %79 {offsets = [0, 0], sizes = [8, 32], strides = [1, 1]} : vector<8x128xf32> to vector<8x32xf32>
    %81 = vector.extract_strided_slice %79 {offsets = [0, 32], sizes = [8, 32], strides = [1, 1]} : vector<8x128xf32> to vector<8x32xf32>
    %82 = vector.extract_strided_slice %79 {offsets = [0, 64], sizes = [8, 32], strides = [1, 1]} : vector<8x128xf32> to vector<8x32xf32>
    %83 = vector.extract_strided_slice %79 {offsets = [0, 96], sizes = [8, 32], strides = [1, 1]} : vector<8x128xf32> to vector<8x32xf32>
    %84 = arith.mulf %81, %69 : vector<8x32xf32>
    %85 = arith.mulf %80, %82 : vector<8x32xf32>
    %86 = arith.addf %84, %85 : vector<8x32xf32>
    %87 = math.tanh %86 : vector<8x32xf32>
    %88 = arith.mulf %83, %87 : vector<8x32xf32>
    %89 = vector.extract_strided_slice %73 {offsets = [0, 128], sizes = [8, 128], strides = [1, 1]} : vector<8x256xf32> to vector<8x128xf32>
    %90 = arith.addf %89, %16 : vector<8x128xf32>
    %91 = arith.mulf %90, %25 : vector<8x128xf32>
    %92 = math.tanh %91 : vector<8x128xf32>
    %93 = arith.mulf %92, %25 : vector<8x128xf32>
    %94 = arith.addf %93, %28 : vector<8x128xf32>
    %95 = vector.extract_strided_slice %94 {offsets = [0, 0], sizes = [8, 32], strides = [1, 1]} : vector<8x128xf32> to vector<8x32xf32>
    %96 = vector.extract_strided_slice %94 {offsets = [0, 64], sizes = [8, 32], strides = [1, 1]} : vector<8x128xf32> to vector<8x32xf32>
    %97 = vector.extract_strided_slice %94 {offsets = [0, 96], sizes = [8, 32], strides = [1, 1]} : vector<8x128xf32> to vector<8x32xf32>
    %98 = arith.mulf %95, %96 : vector<8x32xf32>
    %99 = math.tanh %98 : vector<8x32xf32>
    %100 = arith.mulf %97, %99 : vector<8x32xf32>
    %101 = arith.truncf %88 : vector<8x32xf32> to vector<8x32xbf16>
    %cst_19 = arith.constant dense<0.000000e+00> : vector<8x256xf32>
    %102 = tpu.matmul %101, %3, %cst_19 {dimension_numbers = #tpu.dot_dimension_numbers<[1], [0], [0], [1], [0, 0, 1, 1], [], []>} : vector<8x32xbf16>, vector<32x256xbf16>, vector<8x256xf32> -> vector<8x256xf32>
    %103 = arith.truncf %100 : vector<8x32xf32> to vector<8x32xbf16>
    %cst_20 = arith.constant dense<0.000000e+00> : vector<8x128xf32>
    %104 = tpu.matmul %103, %7, %cst_20 {dimension_numbers = #tpu.dot_dimension_numbers<[1], [0], [0], [1], [0, 0, 1, 1], [], []>} : vector<8x32xbf16>, vector<32x128xbf16>, vector<8x128xf32> -> vector<8x128xf32>
    %105 = vector.extract_strided_slice %102 {offsets = [0, 0], sizes = [8, 128], strides = [1, 1]} : vector<8x256xf32> to vector<8x128xf32>
    %106 = arith.addf %41, %105 : vector<8x128xf32>
    %107 = vector.extract_strided_slice %102 {offsets = [0, 128], sizes = [8, 128], strides = [1, 1]} : vector<8x256xf32> to vector<8x128xf32>
    %108 = arith.addf %107, %16 : vector<8x128xf32>
    %109 = arith.addf %108, %104 : vector<8x128xf32>
    %110 = arith.mulf %106, %25 : vector<8x128xf32>
    %111 = math.tanh %110 : vector<8x128xf32>
    %112 = arith.mulf %111, %25 : vector<8x128xf32>
    %113 = arith.addf %112, %28 : vector<8x128xf32>
    %114 = vector.extract_strided_slice %113 {offsets = [0, 0], sizes = [8, 32], strides = [1, 1]} : vector<8x128xf32> to vector<8x32xf32>
    %115 = vector.extract_strided_slice %113 {offsets = [0, 32], sizes = [8, 32], strides = [1, 1]} : vector<8x128xf32> to vector<8x32xf32>
    %116 = vector.extract_strided_slice %113 {offsets = [0, 64], sizes = [8, 32], strides = [1, 1]} : vector<8x128xf32> to vector<8x32xf32>
    %117 = vector.extract_strided_slice %113 {offsets = [0, 96], sizes = [8, 32], strides = [1, 1]} : vector<8x128xf32> to vector<8x32xf32>
    %118 = arith.mulf %115, %86 : vector<8x32xf32>
    %119 = arith.mulf %114, %116 : vector<8x32xf32>
    %120 = arith.addf %118, %119 : vector<8x32xf32>
    %121 = math.tanh %120 : vector<8x32xf32>
    %122 = arith.mulf %117, %121 : vector<8x32xf32>
    %123 = arith.mulf %109, %25 : vector<8x128xf32>
    %124 = math.tanh %123 : vector<8x128xf32>
    %125 = arith.mulf %124, %25 : vector<8x128xf32>
    %126 = arith.addf %125, %28 : vector<8x128xf32>
    %127 = vector.extract_strided_slice %126 {offsets = [0, 0], sizes = [8, 32], strides = [1, 1]} : vector<8x128xf32> to vector<8x32xf32>
    %128 = vector.extract_strided_slice %126 {offsets = [0, 32], sizes = [8, 32], strides = [1, 1]} : vector<8x128xf32> to vector<8x32xf32>
    %129 = vector.extract_strided_slice %126 {offsets = [0, 64], sizes = [8, 32], strides = [1, 1]} : vector<8x128xf32> to vector<8x32xf32>
    %130 = vector.extract_strided_slice %126 {offsets = [0, 96], sizes = [8, 32], strides = [1, 1]} : vector<8x128xf32> to vector<8x32xf32>
    %131 = arith.mulf %128, %98 : vector<8x32xf32>
    %132 = arith.mulf %127, %129 : vector<8x32xf32>
    %133 = arith.addf %131, %132 : vector<8x32xf32>
    %134 = math.tanh %133 : vector<8x32xf32>
    %135 = arith.mulf %130, %134 : vector<8x32xf32>
    %136 = arith.truncf %122 : vector<8x32xf32> to vector<8x32xbf16>
    %cst_21 = arith.constant dense<0.000000e+00> : vector<8x256xf32>
    %137 = tpu.matmul %136, %3, %cst_21 {dimension_numbers = #tpu.dot_dimension_numbers<[1], [0], [0], [1], [0, 0, 1, 1], [], []>} : vector<8x32xbf16>, vector<32x256xbf16>, vector<8x256xf32> -> vector<8x256xf32>
    %138 = arith.truncf %135 : vector<8x32xf32> to vector<8x32xbf16>
    %cst_22 = arith.constant dense<0.000000e+00> : vector<8x128xf32>
    %139 = tpu.matmul %138, %7, %cst_22 {dimension_numbers = #tpu.dot_dimension_numbers<[1], [0], [0], [1], [0, 0, 1, 1], [], []>} : vector<8x32xbf16>, vector<32x128xbf16>, vector<8x128xf32> -> vector<8x128xf32>
    %140 = vector.extract_strided_slice %137 {offsets = [0, 0], sizes = [8, 128], strides = [1, 1]} : vector<8x256xf32> to vector<8x128xf32>
    %141 = arith.addf %45, %140 : vector<8x128xf32>
    %142 = vector.extract_strided_slice %137 {offsets = [0, 128], sizes = [8, 128], strides = [1, 1]} : vector<8x256xf32> to vector<8x128xf32>
    %143 = arith.addf %142, %16 : vector<8x128xf32>
    %144 = arith.addf %143, %139 : vector<8x128xf32>
    %145 = arith.mulf %141, %25 : vector<8x128xf32>
    %146 = math.tanh %145 : vector<8x128xf32>
    %147 = arith.mulf %146, %25 : vector<8x128xf32>
    %148 = arith.addf %147, %28 : vector<8x128xf32>
    %149 = vector.extract_strided_slice %148 {offsets = [0, 0], sizes = [8, 32], strides = [1, 1]} : vector<8x128xf32> to vector<8x32xf32>
    %150 = vector.extract_strided_slice %148 {offsets = [0, 32], sizes = [8, 32], strides = [1, 1]} : vector<8x128xf32> to vector<8x32xf32>
    %151 = vector.extract_strided_slice %148 {offsets = [0, 64], sizes = [8, 32], strides = [1, 1]} : vector<8x128xf32> to vector<8x32xf32>
    %152 = vector.extract_strided_slice %148 {offsets = [0, 96], sizes = [8, 32], strides = [1, 1]} : vector<8x128xf32> to vector<8x32xf32>
    %153 = arith.mulf %150, %120 : vector<8x32xf32>
    %154 = arith.mulf %149, %151 : vector<8x32xf32>
    %155 = arith.addf %153, %154 : vector<8x32xf32>
    %156 = math.tanh %155 : vector<8x32xf32>
    %157 = arith.mulf %152, %156 : vector<8x32xf32>
    %158 = arith.mulf %144, %25 : vector<8x128xf32>
    %159 = math.tanh %158 : vector<8x128xf32>
    %160 = arith.mulf %159, %25 : vector<8x128xf32>
    %161 = arith.addf %160, %28 : vector<8x128xf32>
    %162 = vector.extract_strided_slice %161 {offsets = [0, 0], sizes = [8, 32], strides = [1, 1]} : vector<8x128xf32> to vector<8x32xf32>
    %163 = vector.extract_strided_slice %161 {offsets = [0, 32], sizes = [8, 32], strides = [1, 1]} : vector<8x128xf32> to vector<8x32xf32>
    %164 = vector.extract_strided_slice %161 {offsets = [0, 64], sizes = [8, 32], strides = [1, 1]} : vector<8x128xf32> to vector<8x32xf32>
    %165 = vector.extract_strided_slice %161 {offsets = [0, 96], sizes = [8, 32], strides = [1, 1]} : vector<8x128xf32> to vector<8x32xf32>
    %166 = arith.mulf %163, %133 : vector<8x32xf32>
    %167 = arith.mulf %162, %164 : vector<8x32xf32>
    %168 = arith.addf %166, %167 : vector<8x32xf32>
    %169 = math.tanh %168 : vector<8x32xf32>
    %170 = arith.mulf %165, %169 : vector<8x32xf32>
    %171 = arith.truncf %157 : vector<8x32xf32> to vector<8x32xbf16>
    %cst_23 = arith.constant dense<0.000000e+00> : vector<8x256xf32>
    %172 = tpu.matmul %171, %3, %cst_23 {dimension_numbers = #tpu.dot_dimension_numbers<[1], [0], [0], [1], [0, 0, 1, 1], [], []>} : vector<8x32xbf16>, vector<32x256xbf16>, vector<8x256xf32> -> vector<8x256xf32>
    %173 = arith.truncf %170 : vector<8x32xf32> to vector<8x32xbf16>
    %cst_24 = arith.constant dense<0.000000e+00> : vector<8x128xf32>
    %174 = tpu.matmul %173, %7, %cst_24 {dimension_numbers = #tpu.dot_dimension_numbers<[1], [0], [0], [1], [0, 0, 1, 1], [], []>} : vector<8x32xbf16>, vector<32x128xbf16>, vector<8x128xf32> -> vector<8x128xf32>
    %175 = vector.extract_strided_slice %172 {offsets = [0, 0], sizes = [8, 128], strides = [1, 1]} : vector<8x256xf32> to vector<8x128xf32>
    %176 = arith.addf %49, %175 : vector<8x128xf32>
    %177 = vector.extract_strided_slice %172 {offsets = [0, 128], sizes = [8, 128], strides = [1, 1]} : vector<8x256xf32> to vector<8x128xf32>
    %178 = arith.addf %177, %16 : vector<8x128xf32>
    %179 = arith.addf %178, %174 : vector<8x128xf32>
    %180 = arith.mulf %176, %25 : vector<8x128xf32>
    %181 = math.tanh %180 : vector<8x128xf32>
    %182 = arith.mulf %181, %25 : vector<8x128xf32>
    %183 = arith.addf %182, %28 : vector<8x128xf32>
    %184 = vector.extract_strided_slice %183 {offsets = [0, 0], sizes = [8, 32], strides = [1, 1]} : vector<8x128xf32> to vector<8x32xf32>
    %185 = vector.extract_strided_slice %183 {offsets = [0, 32], sizes = [8, 32], strides = [1, 1]} : vector<8x128xf32> to vector<8x32xf32>
    %186 = vector.extract_strided_slice %183 {offsets = [0, 64], sizes = [8, 32], strides = [1, 1]} : vector<8x128xf32> to vector<8x32xf32>
    %187 = vector.extract_strided_slice %183 {offsets = [0, 96], sizes = [8, 32], strides = [1, 1]} : vector<8x128xf32> to vector<8x32xf32>
    %188 = arith.mulf %185, %155 : vector<8x32xf32>
    %189 = arith.mulf %184, %186 : vector<8x32xf32>
    %190 = arith.addf %188, %189 : vector<8x32xf32>
    %191 = math.tanh %190 : vector<8x32xf32>
    %192 = arith.mulf %187, %191 : vector<8x32xf32>
    %193 = arith.mulf %179, %25 : vector<8x128xf32>
    %194 = math.tanh %193 : vector<8x128xf32>
    %195 = arith.mulf %194, %25 : vector<8x128xf32>
    %196 = arith.addf %195, %28 : vector<8x128xf32>
    %197 = vector.extract_strided_slice %196 {offsets = [0, 0], sizes = [8, 32], strides = [1, 1]} : vector<8x128xf32> to vector<8x32xf32>
    %198 = vector.extract_strided_slice %196 {offsets = [0, 32], sizes = [8, 32], strides = [1, 1]} : vector<8x128xf32> to vector<8x32xf32>
    %199 = vector.extract_strided_slice %196 {offsets = [0, 64], sizes = [8, 32], strides = [1, 1]} : vector<8x128xf32> to vector<8x32xf32>
    %200 = vector.extract_strided_slice %196 {offsets = [0, 96], sizes = [8, 32], strides = [1, 1]} : vector<8x128xf32> to vector<8x32xf32>
    %201 = arith.mulf %198, %168 : vector<8x32xf32>
    %202 = arith.mulf %197, %199 : vector<8x32xf32>
    %203 = arith.addf %201, %202 : vector<8x32xf32>
    %204 = math.tanh %203 : vector<8x32xf32>
    %205 = arith.mulf %200, %204 : vector<8x32xf32>
    %206 = arith.truncf %192 : vector<8x32xf32> to vector<8x32xbf16>
    %cst_25 = arith.constant dense<0.000000e+00> : vector<8x256xf32>
    %207 = tpu.matmul %206, %3, %cst_25 {dimension_numbers = #tpu.dot_dimension_numbers<[1], [0], [0], [1], [0, 0, 1, 1], [], []>} : vector<8x32xbf16>, vector<32x256xbf16>, vector<8x256xf32> -> vector<8x256xf32>
    %208 = arith.truncf %205 : vector<8x32xf32> to vector<8x32xbf16>
    %cst_26 = arith.constant dense<0.000000e+00> : vector<8x128xf32>
    %209 = tpu.matmul %208, %7, %cst_26 {dimension_numbers = #tpu.dot_dimension_numbers<[1], [0], [0], [1], [0, 0, 1, 1], [], []>} : vector<8x32xbf16>, vector<32x128xbf16>, vector<8x128xf32> -> vector<8x128xf32>
    %210 = vector.extract_strided_slice %207 {offsets = [0, 0], sizes = [8, 128], strides = [1, 1]} : vector<8x256xf32> to vector<8x128xf32>
    %211 = arith.addf %53, %210 : vector<8x128xf32>
    %212 = vector.extract_strided_slice %207 {offsets = [0, 128], sizes = [8, 128], strides = [1, 1]} : vector<8x256xf32> to vector<8x128xf32>
    %213 = arith.addf %212, %16 : vector<8x128xf32>
    %214 = arith.addf %213, %209 : vector<8x128xf32>
    %215 = arith.mulf %211, %25 : vector<8x128xf32>
    %216 = math.tanh %215 : vector<8x128xf32>
    %217 = arith.mulf %216, %25 : vector<8x128xf32>
    %218 = arith.addf %217, %28 : vector<8x128xf32>
    %219 = vector.extract_strided_slice %218 {offsets = [0, 0], sizes = [8, 32], strides = [1, 1]} : vector<8x128xf32> to vector<8x32xf32>
    %220 = vector.extract_strided_slice %218 {offsets = [0, 32], sizes = [8, 32], strides = [1, 1]} : vector<8x128xf32> to vector<8x32xf32>
    %221 = vector.extract_strided_slice %218 {offsets = [0, 64], sizes = [8, 32], strides = [1, 1]} : vector<8x128xf32> to vector<8x32xf32>
    %222 = vector.extract_strided_slice %218 {offsets = [0, 96], sizes = [8, 32], strides = [1, 1]} : vector<8x128xf32> to vector<8x32xf32>
    %223 = arith.mulf %220, %190 : vector<8x32xf32>
    %224 = arith.mulf %219, %221 : vector<8x32xf32>
    %225 = arith.addf %223, %224 : vector<8x32xf32>
    %226 = math.tanh %225 : vector<8x32xf32>
    %227 = arith.mulf %222, %226 : vector<8x32xf32>
    %228 = arith.mulf %214, %25 : vector<8x128xf32>
    %229 = math.tanh %228 : vector<8x128xf32>
    %230 = arith.mulf %229, %25 : vector<8x128xf32>
    %231 = arith.addf %230, %28 : vector<8x128xf32>
    %232 = vector.extract_strided_slice %231 {offsets = [0, 0], sizes = [8, 32], strides = [1, 1]} : vector<8x128xf32> to vector<8x32xf32>
    %233 = vector.extract_strided_slice %231 {offsets = [0, 32], sizes = [8, 32], strides = [1, 1]} : vector<8x128xf32> to vector<8x32xf32>
    %234 = vector.extract_strided_slice %231 {offsets = [0, 64], sizes = [8, 32], strides = [1, 1]} : vector<8x128xf32> to vector<8x32xf32>
    %235 = vector.extract_strided_slice %231 {offsets = [0, 96], sizes = [8, 32], strides = [1, 1]} : vector<8x128xf32> to vector<8x32xf32>
    %236 = arith.mulf %233, %203 : vector<8x32xf32>
    %237 = arith.mulf %232, %234 : vector<8x32xf32>
    %238 = arith.addf %236, %237 : vector<8x32xf32>
    %239 = math.tanh %238 : vector<8x32xf32>
    %240 = arith.mulf %235, %239 : vector<8x32xf32>
    %241 = arith.truncf %227 : vector<8x32xf32> to vector<8x32xbf16>
    %cst_27 = arith.constant dense<0.000000e+00> : vector<8x256xf32>
    %242 = tpu.matmul %241, %3, %cst_27 {dimension_numbers = #tpu.dot_dimension_numbers<[1], [0], [0], [1], [0, 0, 1, 1], [], []>} : vector<8x32xbf16>, vector<32x256xbf16>, vector<8x256xf32> -> vector<8x256xf32>
    %243 = arith.truncf %240 : vector<8x32xf32> to vector<8x32xbf16>
    %cst_28 = arith.constant dense<0.000000e+00> : vector<8x128xf32>
    %244 = tpu.matmul %243, %7, %cst_28 {dimension_numbers = #tpu.dot_dimension_numbers<[1], [0], [0], [1], [0, 0, 1, 1], [], []>} : vector<8x32xbf16>, vector<32x128xbf16>, vector<8x128xf32> -> vector<8x128xf32>
    %245 = vector.extract_strided_slice %242 {offsets = [0, 0], sizes = [8, 128], strides = [1, 1]} : vector<8x256xf32> to vector<8x128xf32>
    %246 = arith.addf %57, %245 : vector<8x128xf32>
    %247 = vector.extract_strided_slice %242 {offsets = [0, 128], sizes = [8, 128], strides = [1, 1]} : vector<8x256xf32> to vector<8x128xf32>
    %248 = arith.addf %247, %16 : vector<8x128xf32>
    %249 = arith.addf %248, %244 : vector<8x128xf32>
    %250 = arith.mulf %246, %25 : vector<8x128xf32>
    %251 = math.tanh %250 : vector<8x128xf32>
    %252 = arith.mulf %251, %25 : vector<8x128xf32>
    %253 = arith.addf %252, %28 : vector<8x128xf32>
    %254 = vector.extract_strided_slice %253 {offsets = [0, 0], sizes = [8, 32], strides = [1, 1]} : vector<8x128xf32> to vector<8x32xf32>
    %255 = vector.extract_strided_slice %253 {offsets = [0, 32], sizes = [8, 32], strides = [1, 1]} : vector<8x128xf32> to vector<8x32xf32>
    %256 = vector.extract_strided_slice %253 {offsets = [0, 64], sizes = [8, 32], strides = [1, 1]} : vector<8x128xf32> to vector<8x32xf32>
    %257 = vector.extract_strided_slice %253 {offsets = [0, 96], sizes = [8, 32], strides = [1, 1]} : vector<8x128xf32> to vector<8x32xf32>
    %258 = arith.mulf %255, %225 : vector<8x32xf32>
    %259 = arith.mulf %254, %256 : vector<8x32xf32>
    %260 = arith.addf %258, %259 : vector<8x32xf32>
    %261 = math.tanh %260 : vector<8x32xf32>
    %262 = arith.mulf %257, %261 : vector<8x32xf32>
    %263 = arith.mulf %249, %25 : vector<8x128xf32>
    %264 = math.tanh %263 : vector<8x128xf32>
    %265 = arith.mulf %264, %25 : vector<8x128xf32>
    %266 = arith.addf %265, %28 : vector<8x128xf32>
    %267 = vector.extract_strided_slice %266 {offsets = [0, 0], sizes = [8, 32], strides = [1, 1]} : vector<8x128xf32> to vector<8x32xf32>
    %268 = vector.extract_strided_slice %266 {offsets = [0, 32], sizes = [8, 32], strides = [1, 1]} : vector<8x128xf32> to vector<8x32xf32>
    %269 = vector.extract_strided_slice %266 {offsets = [0, 64], sizes = [8, 32], strides = [1, 1]} : vector<8x128xf32> to vector<8x32xf32>
    %270 = vector.extract_strided_slice %266 {offsets = [0, 96], sizes = [8, 32], strides = [1, 1]} : vector<8x128xf32> to vector<8x32xf32>
    %271 = arith.mulf %268, %238 : vector<8x32xf32>
    %272 = arith.mulf %267, %269 : vector<8x32xf32>
    %273 = arith.addf %271, %272 : vector<8x32xf32>
    %274 = math.tanh %273 : vector<8x32xf32>
    %275 = arith.mulf %270, %274 : vector<8x32xf32>
    %276 = arith.truncf %262 : vector<8x32xf32> to vector<8x32xbf16>
    %cst_29 = arith.constant dense<0.000000e+00> : vector<8x256xf32>
    %277 = tpu.matmul %276, %3, %cst_29 {dimension_numbers = #tpu.dot_dimension_numbers<[1], [0], [0], [1], [0, 0, 1, 1], [], []>} : vector<8x32xbf16>, vector<32x256xbf16>, vector<8x256xf32> -> vector<8x256xf32>
    %278 = arith.truncf %275 : vector<8x32xf32> to vector<8x32xbf16>
    %cst_30 = arith.constant dense<0.000000e+00> : vector<8x128xf32>
    %279 = tpu.matmul %278, %7, %cst_30 {dimension_numbers = #tpu.dot_dimension_numbers<[1], [0], [0], [1], [0, 0, 1, 1], [], []>} : vector<8x32xbf16>, vector<32x128xbf16>, vector<8x128xf32> -> vector<8x128xf32>
    %280 = vector.extract_strided_slice %277 {offsets = [0, 0], sizes = [8, 128], strides = [1, 1]} : vector<8x256xf32> to vector<8x128xf32>
    %281 = arith.addf %61, %280 : vector<8x128xf32>
    %282 = vector.extract_strided_slice %277 {offsets = [0, 128], sizes = [8, 128], strides = [1, 1]} : vector<8x256xf32> to vector<8x128xf32>
    %283 = arith.addf %282, %16 : vector<8x128xf32>
    %284 = arith.addf %283, %279 : vector<8x128xf32>
    %285 = arith.mulf %281, %25 : vector<8x128xf32>
    %286 = math.tanh %285 : vector<8x128xf32>
    %287 = arith.mulf %286, %25 : vector<8x128xf32>
    %288 = arith.addf %287, %28 : vector<8x128xf32>
    %289 = vector.extract_strided_slice %288 {offsets = [0, 0], sizes = [8, 32], strides = [1, 1]} : vector<8x128xf32> to vector<8x32xf32>
    %290 = vector.extract_strided_slice %288 {offsets = [0, 32], sizes = [8, 32], strides = [1, 1]} : vector<8x128xf32> to vector<8x32xf32>
    %291 = vector.extract_strided_slice %288 {offsets = [0, 64], sizes = [8, 32], strides = [1, 1]} : vector<8x128xf32> to vector<8x32xf32>
    %292 = vector.extract_strided_slice %288 {offsets = [0, 96], sizes = [8, 32], strides = [1, 1]} : vector<8x128xf32> to vector<8x32xf32>
    %293 = arith.mulf %290, %260 : vector<8x32xf32>
    %294 = arith.mulf %289, %291 : vector<8x32xf32>
    %295 = arith.addf %293, %294 : vector<8x32xf32>
    %296 = math.tanh %295 : vector<8x32xf32>
    %297 = arith.mulf %292, %296 : vector<8x32xf32>
    %298 = arith.mulf %284, %25 : vector<8x128xf32>
    %299 = math.tanh %298 : vector<8x128xf32>
    %300 = arith.mulf %299, %25 : vector<8x128xf32>
    %301 = arith.addf %300, %28 : vector<8x128xf32>
    %302 = vector.extract_strided_slice %301 {offsets = [0, 0], sizes = [8, 32], strides = [1, 1]} : vector<8x128xf32> to vector<8x32xf32>
    %303 = vector.extract_strided_slice %301 {offsets = [0, 32], sizes = [8, 32], strides = [1, 1]} : vector<8x128xf32> to vector<8x32xf32>
    %304 = vector.extract_strided_slice %301 {offsets = [0, 64], sizes = [8, 32], strides = [1, 1]} : vector<8x128xf32> to vector<8x32xf32>
    %305 = vector.extract_strided_slice %301 {offsets = [0, 96], sizes = [8, 32], strides = [1, 1]} : vector<8x128xf32> to vector<8x32xf32>
    %306 = arith.mulf %303, %273 : vector<8x32xf32>
    %307 = arith.mulf %302, %304 : vector<8x32xf32>
    %308 = arith.addf %306, %307 : vector<8x32xf32>
    %309 = math.tanh %308 : vector<8x32xf32>
    %310 = arith.mulf %305, %309 : vector<8x32xf32>
    %311 = arith.truncf %297 : vector<8x32xf32> to vector<8x32xbf16>
    %cst_31 = arith.constant dense<0.000000e+00> : vector<8x128xf32>
    %312 = tpu.matmul %311, %5, %cst_31 {dimension_numbers = #tpu.dot_dimension_numbers<[1], [0], [0], [1], [0, 0, 1, 1], [], []>} : vector<8x32xbf16>, vector<32x128xbf16>, vector<8x128xf32> -> vector<8x128xf32>
    %313 = arith.addf %312, %16 : vector<8x128xf32>
    %314 = arith.truncf %310 : vector<8x32xf32> to vector<8x32xbf16>
    %cst_32 = arith.constant dense<0.000000e+00> : vector<8x128xf32>
    %315 = tpu.matmul %314, %7, %cst_32 {dimension_numbers = #tpu.dot_dimension_numbers<[1], [0], [0], [1], [0, 0, 1, 1], [], []>} : vector<8x32xbf16>, vector<32x128xbf16>, vector<8x128xf32> -> vector<8x128xf32>
    %316 = arith.addf %313, %315 : vector<8x128xf32>
    %317 = arith.mulf %316, %25 : vector<8x128xf32>
    %318 = math.tanh %317 : vector<8x128xf32>
    %319 = arith.mulf %318, %25 : vector<8x128xf32>
    %320 = arith.addf %319, %28 : vector<8x128xf32>
    %321 = vector.extract_strided_slice %320 {offsets = [0, 0], sizes = [8, 32], strides = [1, 1]} : vector<8x128xf32> to vector<8x32xf32>
    %322 = vector.extract_strided_slice %320 {offsets = [0, 32], sizes = [8, 32], strides = [1, 1]} : vector<8x128xf32> to vector<8x32xf32>
    %323 = vector.extract_strided_slice %320 {offsets = [0, 64], sizes = [8, 32], strides = [1, 1]} : vector<8x128xf32> to vector<8x32xf32>
    %324 = vector.extract_strided_slice %320 {offsets = [0, 96], sizes = [8, 32], strides = [1, 1]} : vector<8x128xf32> to vector<8x32xf32>
    %325 = arith.mulf %322, %308 : vector<8x32xf32>
    %326 = arith.mulf %321, %323 : vector<8x32xf32>
    %327 = arith.addf %325, %326 : vector<8x32xf32>
    %328 = math.tanh %327 : vector<8x32xf32>
    %329 = arith.mulf %324, %328 : vector<8x32xf32>
    %c0_33 = arith.constant 0 : index
    %c0_34 = arith.constant 0 : index
    %330 = vector.load %arg7[%c0_33, %c0_34] : memref<1x32xf32, #tpu.memory_space<vmem>>, vector<1x32xf32>
    %331 = vector.shape_cast %330 : vector<1x32xf32> to vector<1x32xf32>
    %332 = vector.broadcast %331 : vector<1x32xf32> to vector<8x32xf32>
    %333 = arith.mulf %329, %332 : vector<8x32xf32>
    %cst_35 = arith.constant dense<0.000000e+00> : vector<8xf32>
    %334 = vector.multi_reduction <add>, %333, %cst_35 [1] : vector<8x32xf32> to vector<8xf32>
    %335 = vector.shape_cast %334 : vector<8xf32> to vector<8x1xf32>
    %c0_36 = arith.constant 0 : index
    %c0_37 = arith.constant 0 : index
    %336 = vector.load %arg8[%c0_36, %c0_37] : memref<1x1xf32, #tpu.memory_space<vmem>>, vector<1x1xf32>
    %337 = vector.broadcast %336 : vector<1x1xf32> to vector<8x1xf32>
    %338 = arith.addf %335, %337 : vector<8x1xf32>
    %c0_38 = arith.constant 0 : index
    %c0_39 = arith.constant 0 : index
    %339 = vector.load %arg9[%c0_38, %c0_39] : memref<8x1xf32, #tpu.memory_space<vmem>>, vector<8x1xf32>
    tpu.vector_store %arg9[%c0_38, %c0_39], %338 {strides = array<i32>} : memref<8x1xf32, #tpu.memory_space<vmem>>, vector<8x1xf32>,
    return
  }
}

</mosaic_0001>

<llo_original>
// kernel: net_forward.1
$region0: #{net_forward.1}
  #allocation0 [shape = 'u32[]', space=smem, size = 0x4, offset = 0x4, fixed_abs, tag = 'smem constant byte address 0x4 - core index']
  #allocation1 [shape = 'u32[144,128]{1,0:T(1,128)}', space=vmem, size = 0x12000, scoped, tag = 'internal scratch']
  #allocation2 [shape = 'f32[1,1]{1,0:T(1,128)S(1)}', space=vmem, size = 0x200, scoped, tag = 'scoped memory for net_forward.1']
  %s0 = inlined_call_operand.hbm [shape: f32[8,8], index: 0, kind: input, shape index: {}]
  %s1 = inlined_call_operand.vmem [shape: f32[1,128], index: 1, kind: input, shape index: {}]
  %s2 = inlined_call_operand.hbm [shape: f32[32,128], index: 2, kind: input, shape index: {}]
  %s3 = inlined_call_operand.vmem [shape: f32[1,128], index: 3, kind: input, shape index: {}]
  %s4 = inlined_call_operand.hbm [shape: f32[32,128], index: 4, kind: input, shape index: {}]
  %s5 = inlined_call_operand.hbm [shape: f32[32,128], index: 5, kind: input, shape index: {}]
  %s6 = inlined_call_operand.vmem [shape: f32[1,128], index: 6, kind: input, shape index: {}]
  %s7 = inlined_call_operand.vmem [shape: f32[1,32], index: 7, kind: input, shape index: {}]
  %s8 = inlined_call_operand.<no memory space> [shape: f32[1,1], index: 8, kind: input, shape index: {}]
  %s9 = inlined_call_operand.vmem [shape: f32[8,1], index: 9, kind: output, shape index: {}]
  %s10 = sld [smem:[#allocation0]]
  $region62: #{net_forward.1} parent=0
    _
  %s12 = ssub.s32 1, %s10
  %s13 = scalar_select 0, %s12, %s10
  %v14 = vstv %s8
  %15 = vst [vmem:[#allocation2] sm:$0x1] %v14
  $region1: #{net_forward.1} parent=0
    #allocation3 [shape = 'u8[4096]{0}', space=vmem, size = 0x1000, scoped, tag = 'input window, operand 0, single buffered']
    #allocation4 [shape = 's32[1]{0}', space=sflag, size = 0x4, scoped, tag = 'scoped memory for net_forward.1']
    #allocation5 [shape = 'u8[16384]{0}', space=vmem, size = 0x4000, scoped, tag = 'input window, operand 2, single buffered']
    #allocation6 [shape = 's32[1]{0}', space=sflag, size = 0x4, scoped, tag = 'scoped memory for net_forward.1']
    #allocation7 [shape = 'u8[16384]{0}', space=vmem, size = 0x4000, scoped, tag = 'input window, operand 4, single buffered']
    #allocation8 [shape = 'u8[16384]{0}', space=vmem, size = 0x4000, scoped, tag = 'input window, operand 5, single buffered']
    #allocation9 [shape = 's32[1]{0}', space=sflag, size = 0x4, scoped, tag = 'scoped memory for net_forward.1']
    %16 = vsyncpa [#allocation4], 0
    %17 = vsyncpa [#allocation6], 0
    %18 = vsyncpa [#allocation9], 0
    // Predicated region
    $region2: #{net_forward.1} parent=1 // pred_check
      _
    $region3: #{net_forward.1} parent=1 // pred_check_branch
      %20 = sbr.rel (0) target = $region5
    $region4: #{net_forward.1} parent=1 // pred_region
      %s22 = ssub.s32 128, 128
      %23 = vsyncadd [#allocation4], %s22
      %s25 = sshll.u32 [#allocation3], 4
      %s26 = int_to_ptr.vmem [resolvable:$true] %s25
      %28 = dma.hbm_to_vmem [thread:$0]  %s0, 128, %s26, [#allocation4]
    $region5: #{net_forward.1} parent=1 // pred_fallthru
      _
    // Predicated region
    $region6: #{net_forward.1} parent=1 // pred_check
      _
    $region7: #{net_forward.1} parent=1 // pred_check_branch
      %30 = sbr.rel (0) target = $region9
    $region8: #{net_forward.1} parent=1 // pred_region
      _
    $region9: #{net_forward.1} parent=1 // pred_fallthru
      _
    // Predicated region
    $region10: #{net_forward.1} parent=1 // pred_check
      _
    $region11: #{net_forward.1} parent=1 // pred_check_branch
      %32 = sbr.rel (0) target = $region13
    $region12: #{net_forward.1} parent=1 // pred_region
      %s34 = ssub.s32 512, 512
      %35 = vsyncadd [#allocation6], %s34
      %s36 = sshll.u32 [#allocation5], 4
      %s37 = int_to_ptr.vmem [resolvable:$true] %s36
      %42 = dma.hbm_to_vmem [thread:$0]  %s2, 512, %s37, [#allocation6], 128, 128, 8
    $region13: #{net_forward.1} parent=1 // pred_fallthru
      _
    // Predicated region
    $region14: #{net_forward.1} parent=1 // pred_check
      _
    $region15: #{net_forward.1} parent=1 // pred_check_branch
      %44 = sbr.rel (0) target = $region17
    $region16: #{net_forward.1} parent=1 // pred_region
      _
    $region17: #{net_forward.1} parent=1 // pred_fallthru
      _
    // Predicated region
    $region18: #{net_forward.1} parent=1 // pred_check
      _
    $region19: #{net_forward.1} parent=1 // pred_check_branch
      %46 = sbr.rel (0) target = $region21
    $region20: #{net_forward.1} parent=1 // pred_region
      %s48 = ssub.s32 512, 512
      %49 = vsyncadd [#allocation6], %s48
      %s50 = sshll.u32 [#allocation7], 4
      %s51 = int_to_ptr.vmem [resolvable:$true] %s50
      %56 = dma.hbm_to_vmem [thread:$0]  %s4, 512, %s51, [#allocation6], 128, 128, 8
    $region21: #{net_forward.1} parent=1 // pred_fallthru
      _
    // Predicated region
    $region22: #{net_forward.1} parent=1 // pred_check
      _
    $region23: #{net_forward.1} parent=1 // pred_check_branch
      %58 = sbr.rel (0) target = $region25
    $region24: #{net_forward.1} parent=1 // pred_region
      %s60 = ssub.s32 512, 512
      %61 = vsyncadd [#allocation9], %s60
      %s62 = sshll.u32 [#allocation8], 4
      %s63 = int_to_ptr.vmem [resolvable:$true] %s62
      %68 = dma.hbm_to_vmem [thread:$0]  %s5, 512, %s63, [#allocation9], 128, 128, 8
    $region25: #{net_forward.1} parent=1 // pred_fallthru
      _
    // Predicated region
    $region26: #{net_forward.1} parent=1 // pred_check
      _
    $region27: #{net_forward.1} parent=1 // pred_check_branch
      %70 = sbr.rel (0) target = $region29
    $region28: #{net_forward.1} parent=1 // pred_region
      _
    $region29: #{net_forward.1} parent=1 // pred_fallthru
      _
    // Predicated region
    $region30: #{net_forward.1} parent=1 // pred_check
      _
    $region31: #{net_forward.1} parent=1 // pred_check_branch
      %72 = sbr.rel (0) target = $region33
    $region32: #{net_forward.1} parent=1 // pred_region
      _
    $region33: #{net_forward.1} parent=1 // pred_fallthru
      _
    // Predicated region
    $region34: #{net_forward.1} parent=1 // pred_check
      _
    $region35: #{net_forward.1} parent=1 // pred_check_branch
      %74 = sbr.rel (0) target = $region37
    $region36: #{net_forward.1} parent=1 // pred_region
      _
    $region37: #{net_forward.1} parent=1 // pred_fallthru
      _
    // Predicated region
    $region38: #{net_forward.1} parent=1 // pred_check
      _
    $region39: #{net_forward.1} parent=1 // pred_check_branch
      %76 = sbr.rel (0) target = $region41
    $region40: #{net_forward.1} parent=1 // pred_region
      %77 = dma.done [#allocation4], 128
    $region41: #{net_forward.1} parent=1 // pred_fallthru
      _
    // Predicated region
    $region42: #{net_forward.1} parent=1 // pred_check
      _
    $region43: #{net_forward.1} parent=1 // pred_check_branch
      %79 = sbr.rel (0) target = $region45
    $region44: #{net_forward.1} parent=1 // pred_region
      %80 = dma.done [#allocation6], 512
    $region45: #{net_forward.1} parent=1 // pred_fallthru
      _
    // Predicated region
    $region46: #{net_forward.1} parent=1 // pred_check
      _
    $region47: #{net_forward.1} parent=1 // pred_check_branch
      %82 = sbr.rel (0) target = $region49
    $region48: #{net_forward.1} parent=1 // pred_region
      %83 = dma.done [#allocation6], 512
    $region49: #{net_forward.1} parent=1 // pred_fallthru
      _
    // Predicated region
    $region50: #{net_forward.1} parent=1 // pred_check
      _
    $region51: #{net_forward.1} parent=1 // pred_check_branch
      %85 = sbr.rel (0) target = $region53
    $region52: #{net_forward.1} parent=1 // pred_region
      %86 = dma.done [#allocation9], 512
    $region53: #{net_forward.1} parent=1 // pred_fallthru
      _
    %v88 = vld [vmem:[#allocation5] sm:$0xff]
    %v89 = vld [vmem:[#allocation5 + $0x8] sm:$0xff]
    %v90 = vld [vmem:[#allocation5 + $0x10] sm:$0xff]
    %v91 = vld [vmem:[#allocation5 + $0x18] sm:$0xff]
    %v92 = vld [vmem:[#allocation7] sm:$0xff]
    %v93 = vld [vmem:[#allocation7 + $0x8] sm:$0xff]
    %v94 = vld [vmem:[#allocation7 + $0x10] sm:$0xff]
    %v95 = vld [vmem:[#allocation7 + $0x18] sm:$0xff]
    %v96 = vpack.c.bf16 %v89, %v88
    %v97 = vpack.c.bf16 %v93, %v92
    %v98 = vpack.c.bf16 %v91, %v90
    %v99 = vpack.c.bf16 %v95, %v94
    %v100 = vld [vmem:[#allocation8] sm:$0xff]
    %v101 = vld [vmem:[#allocation8 + $0x8] sm:$0xff]
    %v102 = vld [vmem:[#allocation8 + $0x10] sm:$0xff]
    %v103 = vld [vmem:[#allocation8 + $0x18] sm:$0xff]
    %v104 = vpack.c.bf16 %v101, %v100
    %v105 = vpack.c.bf16 %v103, %v102
    %v106 = vld [vmem:[%s1] sm:$0x1]
    %v108 = vlaneseq
    %v109 = vshrl.u32 %v108, 7
    %v110 = vsub.s32 0, %v109
    %v111 = vrot.slane %v106, %v110
    %v113 = vld [vmem:[%s3] sm:$0x1]
    %v115 = vlaneseq
    %v116 = vshrl.u32 %v115, 7
    %v117 = vsub.s32 0, %v116
    %v118 = vrot.slane %v113, %v117
    %v120 = vld [vmem:[%s6] sm:$0x1]
    %v122 = vlaneseq
    %v123 = vshrl.u32 %v122, 7
    %v124 = vsub.s32 0, %v123
    %v125 = vrot.slane %v120, %v124
    %v127 = vlaneseq
    %v128 = vand.u32 %v127, 127
    %vm129 = vcmp.ge.s32.totalorder %v128, 64
    %vm130 = vcmp.lt.s32.totalorder %v128, 96
    %vm131 = vmand %vm129, %vm130
    %v132 = vsel %vm131, 1.0, 0.5
    %v133 = vsel %vm131, 0.0, 0.5
    %v134 = vld [vmem:[#allocation3] sm:$0xff]
    %136 = vset.pattern.permute.xlu0 0
    %137 = vperm.xlu0 %136, %v134
    %v138 = vpop.permute.xlu0 %137
    %v140 = vmul.f32 %v138, %v111
    %v141 = vadd.f32 %v140, %v118
    %142 = vset.pattern.permute.xlu0 1
    %143 = vperm.xlu0 %142, %v134
    %v144 = vpop.permute.xlu0 %143
    %v146 = vmul.f32 %v144, %v111
    %v147 = vadd.f32 %v146, %v118
    %148 = vset.pattern.permute.xlu0 2
    %149 = vperm.xlu0 %148, %v134
    %v150 = vpop.permute.xlu0 %149
    %v152 = vmul.f32 %v150, %v111
    %v153 = vadd.f32 %v152, %v118
    %154 = vset.pattern.permute.xlu0 3
    %155 = vperm.xlu0 %154, %v134
    %v156 = vpop.permute.xlu0 %155
    %v158 = vmul.f32 %v156, %v111
    %v159 = vadd.f32 %v158, %v118
    %160 = vset.pattern.permute.xlu0 4
    %161 = vperm.xlu0 %160, %v134
    %v162 = vpop.permute.xlu0 %161
    %v164 = vmul.f32 %v162, %v111
    %v165 = vadd.f32 %v164, %v118
    %166 = vset.pattern.permute.xlu0 5
    %167 = vperm.xlu0 %166, %v134
    %v168 = vpop.permute.xlu0 %167
    %v170 = vmul.f32 %v168, %v111
    %v171 = vadd.f32 %v170, %v118
    %172 = vset.pattern.permute.xlu0 6
    %173 = vperm.xlu0 %172, %v134
    %v174 = vpop.permute.xlu0 %173
    %v176 = vmul.f32 %v174, %v111
    %v177 = vadd.f32 %v176, %v118
    %178 = vset.pattern.permute.xlu0 7
    %179 = vperm.xlu0 %178, %v134
    %v180 = vpop.permute.xlu0 %179
    %v182 = vmul.f32 %v180, %v111
    %v183 = vadd.f32 %v182, %v118
    %v184 = vmul.f32 %v141, %v132
    %v185 = vtanh.pop %v184
    %v186 = vmul.f32 %v185, %v132
    %v187 = vadd.f32 %v186, %v133
    %189 = vrot.lane.b32.xlu0 %v187, 64
    %v190 = vpop.permute.xlu0 %189
    %v192 = vmul.f32 %v187, %v190
    %v193 = vtanh.pop %v192
    %195 = vrot.lane.b32.xlu0 %v193, 96
    %v196 = vpop.permute.xlu0 %195
    %v198 = vmul.f32 %v187, %v196
    %v199 = vpack.c.bf16 %v198, %v198
    %201 = vrot.lane.b32.xlu0 %v199, 32
    %v202 = vpop.permute.xlu0 %201
    %vm203 = vcmask 261120
    %v205 = vsel %vm203, %v202, 0
    %207 = vmatprep.subr.bf16.mxu0 0
    %208 = vmatpush1.bf16.msra.mxu0 0
    %209 = vmatprep.subr.bf16.mxu0 0
    %210 = vmatpush1.bf16.msra.mxu0 0
    %211 = vmatprep.subr.bf16.mxu0 0
    %212 = vmatpush1.bf16.msra.mxu0 0
    %213 = vmatprep.subr.bf16.mxu0 0
    %214 = vmatpush1.bf16.msra.mxu0 0
    %215 = vmatprep.subr.bf16.mxu0 0
    %216 = vmatpush1.bf16.msra.mxu0 0
    %217 = vmatprep.subr.bf16.mxu0 0
    %218 = vmatpush1.bf16.msra.mxu0 0
    %219 = vmatprep.subr.bf16.mxu0 %v99
    %220 = vmatpush1.bf16.msra.mxu0 %v98
    %221 = vmatprep.subr.bf16.mxu0 %v97
    %222 = vmatpush1.bf16.msra.mxu0 %v96
    %223 = vmatprep.subr.bf16.mxu0 0
    %224 = vmatpush2.bf16.msra.mxu0 0
    %225 = vmatprep.subr.bf16.mxu0 0
    %226 = vmatpush2.bf16.msra.mxu0 0
    %227 = vmatprep.subr.bf16.mxu0 0
    %228 = vmatpush2.bf16.msra.mxu0 0
    %229 = vmatprep.subr.bf16.mxu0 0
    %230 = vmatpush2.bf16.msra.mxu0 0
    %231 = vmatprep.subr.bf16.mxu0 0
    %232 = vmatpush2.bf16.msra.mxu0 0
    %233 = vmatprep.subr.bf16.mxu0 0
    %234 = vmatpush2.bf16.msra.mxu0 0
    %235 = vmatprep.subr.bf16.mxu0 0
    %236 = vmatpush2.bf16.msra.mxu0 0
    %237 = vmatprep.subr.bf16.mxu0 0
    %238 = vmatpush2.bf16.msra.mxu0 0
    %239 = vmatprep.mubr.bf16.mxu0 0
    %240 = vmatmul.mubr.bf16.gmra.mxu0 %v205
    %v241 = vpop.f32.mrf.mxu0
    %v242 = vadd.f32 0.0, %v241
    %v243 = vpop.f32.mrf.mxu0
    %v244 = vadd.f32 0.0, %v243
    %v245 = vpop.f32.mrf.mxu0
    %v246 = vpop.f32.mrf.mxu0
    %247 = vdwg.mxu0
    %v248 = vadd.f32 %v147, %v242
    %v249 = vmul.f32 %v248, %v132
    %v250 = vtanh.pop %v249
    %v251 = vmul.f32 %v250, %v132
    %v252 = vadd.f32 %v251, %v133
    %254 = vrot.lane.b32.xlu0 %v192, 32
    %v255 = vpop.permute.xlu0 %254
    %v257 = vmul.f32 %v252, %v255
    %259 = vrot.lane.b32.xlu0 %v252, 64
    %v260 = vpop.permute.xlu0 %259
    %v262 = vmul.f32 %v252, %v260
    %264 = vrot.lane.b32.xlu0 %v262, 32
    %v265 = vpop.permute.xlu0 %264
    %v267 = vadd.f32 %v257, %v265
    %v268 = vtanh.pop %v267
    %270 = vrot.lane.b32.xlu0 %v268, 64
    %v271 = vpop.permute.xlu0 %270
    %v273 = vmul.f32 %v252, %v271
    %v274 = vadd.f32 %v244, %v125
    %v275 = vmul.f32 %v274, %v132
    %v276 = vtanh.pop %v275
    %v277 = vmul.f32 %v276, %v132
    %v278 = vadd.f32 %v277, %v133
    %280 = vrot.lane.b32.xlu0 %v278, 64
    %v281 = vpop.permute.xlu0 %280
    %v283 = vmul.f32 %v278, %v281
    %v284 = vtanh.pop %v283
    %286 = vrot.lane.b32.xlu0 %v284, 96
    %v287 = vpop.permute.xlu0 %286
    %v289 = vmul.f32 %v278, %v287
    %v290 = vpack.c.bf16 %v273, %v273
    %292 = vrot.lane.b32.xlu0 %v290, 32
    %v293 = vpop.permute.xlu0 %292
    %v295 = vsel %vm203, %v293, 0
    %297 = vmatprep.subr.bf16.mxu0 0
    %298 = vmatpush1.bf16.msra.mxu0 0
    %299 = vmatprep.subr.bf16.mxu0 0
    %300 = vmatpush1.bf16.msra.mxu0 0
    %301 = vmatprep.subr.bf16.mxu0 0
    %302 = vmatpush1.bf16.msra.mxu0 0
    %303 = vmatprep.subr.bf16.mxu0 0
    %304 = vmatpush1.bf16.msra.mxu0 0
    %305 = vmatprep.subr.bf16.mxu0 0
    %306 = vmatpush1.bf16.msra.mxu0 0
    %307 = vmatprep.subr.bf16.mxu0 0
    %308 = vmatpush1.bf16.msra.mxu0 0
    %309 = vmatprep.subr.bf16.mxu0 %v99
    %310 = vmatpush1.bf16.msra.mxu0 %v98
    %311 = vmatprep.subr.bf16.mxu0 %v97
    %312 = vmatpush1.bf16.msra.mxu0 %v96
    %313 = vmatprep.subr.bf16.mxu0 0
    %314 = vmatpush2.bf16.msra.mxu0 0
    %315 = vmatprep.subr.bf16.mxu0 0
    %316 = vmatpush2.bf16.msra.mxu0 0
    %317 = vmatprep.subr.bf16.mxu0 0
    %318 = vmatpush2.bf16.msra.mxu0 0
    %319 = vmatprep.subr.bf16.mxu0 0
    %320 = vmatpush2.bf16.msra.mxu0 0
    %321 = vmatprep.subr.bf16.mxu0 0
    %322 = vmatpush2.bf16.msra.mxu0 0
    %323 = vmatprep.subr.bf16.mxu0 0
    %324 = vmatpush2.bf16.msra.mxu0 0
    %325 = vmatprep.subr.bf16.mxu0 0
    %326 = vmatpush2.bf16.msra.mxu0 0
    %327 = vmatprep.subr.bf16.mxu0 0
    %328 = vmatpush2.bf16.msra.mxu0 0
    %329 = vmatprep.mubr.bf16.mxu0 0
    %330 = vmatmul.mubr.bf16.gmra.mxu0 %v295
    %v331 = vpop.f32.mrf.mxu0
    %v332 = vadd.f32 0.0, %v331
    %v333 = vpop.f32.mrf.mxu0
    %v334 = vadd.f32 0.0, %v333
    %v335 = vpop.f32.mrf.mxu0
    %v336 = vpop.f32.mrf.mxu0
    %337 = vdwg.mxu0
    %v338 = vpack.c.bf16 %v289, %v289
    %340 = vrot.lane.b32.xlu0 %v338, 32
    %v341 = vpop.permute.xlu0 %340
    %v343 = vsel %vm203, %v341, 0
    %345 = vmatprep.subr.bf16.mxu0 0
    %346 = vmatpush1.bf16.msra.mxu0 0
    %347 = vmatprep.subr.bf16.mxu0 0
    %348 = vmatpush1.bf16.msra.mxu0 0
    %349 = vmatprep.subr.bf16.mxu0 0
    %350 = vmatpush1.bf16.msra.mxu0 0
    %351 = vmatprep.subr.bf16.mxu0 0
    %352 = vmatpush1.bf16.msra.mxu0 0
    %353 = vmatprep.subr.bf16.mxu0 0
    %354 = vmatpush1.bf16.msra.mxu0 0
    %355 = vmatprep.subr.bf16.mxu0 0
    %356 = vmatpush1.bf16.msra.mxu0 0
    %357 = vmatprep.subr.bf16.mxu0 0
    %358 = vmatpush1.bf16.msra.mxu0 %v105
    %359 = vmatprep.subr.bf16.mxu0 0
    %360 = vmatpush1.bf16.msra.mxu0 %v104
    %361 = vmatprep.subr.bf16.mxu0 0
    %362 = vmatpush2.bf16.msra.mxu0 0
    %363 = vmatprep.subr.bf16.mxu0 0
    %364 = vmatpush2.bf16.msra.mxu0 0
    %365 = vmatprep.subr.bf16.mxu0 0
    %366 = vmatpush2.bf16.msra.mxu0 0
    %367 = vmatprep.subr.bf16.mxu0 0
    %368 = vmatpush2.bf16.msra.mxu0 0
    %369 = vmatprep.subr.bf16.mxu0 0
    %370 = vmatpush2.bf16.msra.mxu0 0
    %371 = vmatprep.subr.bf16.mxu0 0
    %372 = vmatpush2.bf16.msra.mxu0 0
    %373 = vmatprep.subr.bf16.mxu0 0
    %374 = vmatpush2.bf16.msra.mxu0 0
    %375 = vmatprep.subr.bf16.mxu0 0
    %376 = vmatpush2.bf16.msra.mxu0 0
    %377 = vmatprep.mubr.bf16.mxu0 0
    %378 = vmatmul.mubr.bf16.gmra.mxu0 %v343
    %v379 = vpop.f32.mrf.mxu0
    %v380 = vadd.f32 0.0, %v379
    %v381 = vpop.f32.mrf.mxu0
    %v382 = vpop.f32.mrf.mxu0
    %v383 = vpop.f32.mrf.mxu0
    %384 = vdwg.mxu0
    %v385 = vadd.f32 %v153, %v332
    %v386 = vadd.f32 %v334, %v125
    %v387 = vadd.f32 %v386, %v380
    %v388 = vmul.f32 %v385, %v132
    %v389 = vtanh.pop %v388
    %v390 = vmul.f32 %v389, %v132
    %v391 = vadd.f32 %v390, %v133
    %v392 = vmul.f32 %v391, %v267
    %394 = vrot.lane.b32.xlu0 %v391, 64
    %v395 = vpop.permute.xlu0 %394
    %v397 = vmul.f32 %v391, %v395
    %399 = vrot.lane.b32.xlu0 %v397, 32
    %v400 = vpop.permute.xlu0 %399
    %v402 = vadd.f32 %v392, %v400
    %v403 = vtanh.pop %v402
    %405 = vrot.lane.b32.xlu0 %v403, 64
    %v406 = vpop.permute.xlu0 %405
    %v408 = vmul.f32 %v391, %v406
    %v409 = vmul.f32 %v387, %v132
    %v410 = vtanh.pop %v409
    %v411 = vmul.f32 %v410, %v132
    %v412 = vadd.f32 %v411, %v133
    %414 = vrot.lane.b32.xlu0 %v283, 32
    %v415 = vpop.permute.xlu0 %414
    %v417 = vmul.f32 %v412, %v415
    %419 = vrot.lane.b32.xlu0 %v412, 64
    %v420 = vpop.permute.xlu0 %419
    %v422 = vmul.f32 %v412, %v420
    %424 = vrot.lane.b32.xlu0 %v422, 32
    %v425 = vpop.permute.xlu0 %424
    %v427 = vadd.f32 %v417, %v425
    %v428 = vtanh.pop %v427
    %430 = vrot.lane.b32.xlu0 %v428, 64
    %v431 = vpop.permute.xlu0 %430
    %v433 = vmul.f32 %v412, %v431
    %v434 = vpack.c.bf16 %v408, %v408
    %436 = vrot.lane.b32.xlu0 %v434, 32
    %v437 = vpop.permute.xlu0 %436
    %v439 = vsel %vm203, %v437, 0
    %441 = vmatprep.subr.bf16.mxu0 0
    %442 = vmatpush1.bf16.msra.mxu0 0
    %443 = vmatprep.subr.bf16.mxu0 0
    %444 = vmatpush1.bf16.msra.mxu0 0
    %445 = vmatprep.subr.bf16.mxu0 0
    %446 = vmatpush1.bf16.msra.mxu0 0
    %447 = vmatprep.subr.bf16.mxu0 0
    %448 = vmatpush1.bf16.msra.mxu0 0
    %449 = vmatprep.subr.bf16.mxu0 0
    %450 = vmatpush1.bf16.msra.mxu0 0
    %451 = vmatprep.subr.bf16.mxu0 0
    %452 = vmatpush1.bf16.msra.mxu0 0
    %453 = vmatprep.subr.bf16.mxu0 %v99
    %454 = vmatpush1.bf16.msra.mxu0 %v98
    %455 = vmatprep.subr.bf16.mxu0 %v97
    %456 = vmatpush1.bf16.msra.mxu0 %v96
    %457 = vmatprep.subr.bf16.mxu0 0
    %458 = vmatpush2.bf16.msra.mxu0 0
    %459 = vmatprep.subr.bf16.mxu0 0
    %460 = vmatpush2.bf16.msra.mxu0 0
    %461 = vmatprep.subr.bf16.mxu0 0
    %462 = vmatpush2.bf16.msra.mxu0 0
    %463 = vmatprep.subr.bf16.mxu0 0
    %464 = vmatpush2.bf16.msra.mxu0 0
    %465 = vmatprep.subr.bf16.mxu0 0
    %466 = vmatpush2.bf16.msra.mxu0 0
    %467 = vmatprep.subr.bf16.mxu0 0
    %468 = vmatpush2.bf16.msra.mxu0 0
    %469 = vmatprep.subr.bf16.mxu0 0
    %470 = vmatpush2.bf16.msra.mxu0 0
    %471 = vmatprep.subr.bf16.mxu0 0
    %472 = vmatpush2.bf16.msra.mxu0 0
    %473 = vmatprep.mubr.bf16.mxu0 0
    %474 = vmatmul.mubr.bf16.gmra.mxu0 %v439
    %v475 = vpop.f32.mrf.mxu0
    %v476 = vadd.f32 0.0, %v475
    %v477 = vpop.f32.mrf.mxu0
    %v478 = vadd.f32 0.0, %v477
    %v479 = vpop.f32.mrf.mxu0
    %v480 = vpop.f32.mrf.mxu0
    %481 = vdwg.mxu0
    %v482 = vpack.c.bf16 %v433, %v433
    %484 = vrot.lane.b32.xlu0 %v482, 32
    %v485 = vpop.permute.xlu0 %484
    %v487 = vsel %vm203, %v485, 0
    %489 = vmatprep.subr.bf16.mxu0 0
    %490 = vmatpush1.bf16.msra.mxu0 0
    %491 = vmatprep.subr.bf16.mxu0 0
    %492 = vmatpush1.bf16.msra.mxu0 0
    %493 = vmatprep.subr.bf16.mxu0 0
    %494 = vmatpush1.bf16.msra.mxu0 0
    %495 = vmatprep.subr.bf16.mxu0 0
    %496 = vmatpush1.bf16.msra.mxu0 0
    %497 = vmatprep.subr.bf16.mxu0 0
    %498 = vmatpush1.bf16.msra.mxu0 0
    %499 = vmatprep.subr.bf16.mxu0 0
    %500 = vmatpush1.bf16.msra.mxu0 0
    %501 = vmatprep.subr.bf16.mxu0 0
    %502 = vmatpush1.bf16.msra.mxu0 %v105
    %503 = vmatprep.subr.bf16.mxu0 0
    %504 = vmatpush1.bf16.msra.mxu0 %v104
    %505 = vmatprep.subr.bf16.mxu0 0
    %506 = vmatpush2.bf16.msra.mxu0 0
    %507 = vmatprep.subr.bf16.mxu0 0
    %508 = vmatpush2.bf16.msra.mxu0 0
    %509 = vmatprep.subr.bf16.mxu0 0
    %510 = vmatpush2.bf16.msra.mxu0 0
    %511 = vmatprep.subr.bf16.mxu0 0
    %512 = vmatpush2.bf16.msra.mxu0 0
    %513 = vmatprep.subr.bf16.mxu0 0
    %514 = vmatpush2.bf16.msra.mxu0 0
    %515 = vmatprep.subr.bf16.mxu0 0
    %516 = vmatpush2.bf16.msra.mxu0 0
    %517 = vmatprep.subr.bf16.mxu0 0
    %518 = vmatpush2.bf16.msra.mxu0 0
    %519 = vmatprep.subr.bf16.mxu0 0
    %520 = vmatpush2.bf16.msra.mxu0 0
    %521 = vmatprep.mubr.bf16.mxu0 0
    %522 = vmatmul.mubr.bf16.gmra.mxu0 %v487
    %v523 = vpop.f32.mrf.mxu0
    %v524 = vadd.f32 0.0, %v523
    %v525 = vpop.f32.mrf.mxu0
    %v526 = vpop.f32.mrf.mxu0
    %v527 = vpop.f32.mrf.mxu0
    %528 = vdwg.mxu0
    %v529 = vadd.f32 %v159, %v476
    %v530 = vadd.f32 %v478, %v125
    %v531 = vadd.f32 %v530, %v524
    %v532 = vmul.f32 %v529, %v132
    %v533 = vtanh.pop %v532
    %v534 = vmul.f32 %v533, %v132
    %v535 = vadd.f32 %v534, %v133
    %v536 = vmul.f32 %v535, %v402
    %538 = vrot.lane.b32.xlu0 %v535, 64
    %v539 = vpop.permute.xlu0 %538
    %v541 = vmul.f32 %v535, %v539
    %543 = vrot.lane.b32.xlu0 %v541, 32
    %v544 = vpop.permute.xlu0 %543
    %v546 = vadd.f32 %v536, %v544
    %v547 = vtanh.pop %v546
    %549 = vrot.lane.b32.xlu0 %v547, 64
    %v550 = vpop.permute.xlu0 %549
    %v552 = vmul.f32 %v535, %v550
    %v553 = vmul.f32 %v531, %v132
    %v554 = vtanh.pop %v553
    %v555 = vmul.f32 %v554, %v132
    %v556 = vadd.f32 %v555, %v133
    %v557 = vmul.f32 %v556, %v427
    %559 = vrot.lane.b32.xlu0 %v556, 64
    %v560 = vpop.permute.xlu0 %559
    %v562 = vmul.f32 %v556, %v560
    %564 = vrot.lane.b32.xlu0 %v562, 32
    %v565 = vpop.permute.xlu0 %564
    %v567 = vadd.f32 %v557, %v565
    %v568 = vtanh.pop %v567
    %570 = vrot.lane.b32.xlu0 %v568, 64
    %v571 = vpop.permute.xlu0 %570
    %v573 = vmul.f32 %v556, %v571
    %v574 = vpack.c.bf16 %v552, %v552
    %576 = vrot.lane.b32.xlu0 %v574, 32
    %v577 = vpop.permute.xlu0 %576
    %v579 = vsel %vm203, %v577, 0
    %581 = vmatprep.subr.bf16.mxu0 0
    %582 = vmatpush1.bf16.msra.mxu0 0
    %583 = vmatprep.subr.bf16.mxu0 0
    %584 = vmatpush1.bf16.msra.mxu0 0
    %585 = vmatprep.subr.bf16.mxu0 0
    %586 = vmatpush1.bf16.msra.mxu0 0
    %587 = vmatprep.subr.bf16.mxu0 0
    %588 = vmatpush1.bf16.msra.mxu0 0
    %589 = vmatprep.subr.bf16.mxu0 0
    %590 = vmatpush1.bf16.msra.mxu0 0
    %591 = vmatprep.subr.bf16.mxu0 0
    %592 = vmatpush1.bf16.msra.mxu0 0
    %593 = vmatprep.subr.bf16.mxu0 %v99
    %594 = vmatpush1.bf16.msra.mxu0 %v98
    %595 = vmatprep.subr.bf16.mxu0 %v97
    %596 = vmatpush1.bf16.msra.mxu0 %v96
    %597 = vmatprep.subr.bf16.mxu0 0
    %598 = vmatpush2.bf16.msra.mxu0 0
    %599 = vmatprep.subr.bf16.mxu0 0
    %600 = vmatpush2.bf16.msra.mxu0 0
    %601 = vmatprep.subr.bf16.mxu0 0
    %602 = vmatpush2.bf16.msra.mxu0 0
    %603 = vmatprep.subr.bf16.mxu0 0
    %604 = vmatpush2.bf16.msra.mxu0 0
    %605 = vmatprep.subr.bf16.mxu0 0
    %606 = vmatpush2.bf16.msra.mxu0 0
    %607 = vmatprep.subr.bf16.mxu0 0
    %608 = vmatpush2.bf16.msra.mxu0 0
    %609 = vmatprep.subr.bf16.mxu0 0
    %610 = vmatpush2.bf16.msra.mxu0 0
    %611 = vmatprep.subr.bf16.mxu0 0
    %612 = vmatpush2.bf16.msra.mxu0 0
    %613 = vmatprep.mubr.bf16.mxu0 0
    %614 = vmatmul.mubr.bf16.gmra.mxu0 %v579
    %v615 = vpop.f32.mrf.mxu0
    %v616 = vadd.f32 0.0, %v615
    %v617 = vpop.f32.mrf.mxu0
    %v618 = vadd.f32 0.0, %v617
    %v619 = vpop.f32.mrf.mxu0
    %v620 = vpop.f32.mrf.mxu0
    %621 = vdwg.mxu0
    %v622 = vpack.c.bf16 %v573, %v573
    %624 = vrot.lane.b32.xlu0 %v622, 32
    %v625 = vpop.permute.xlu0 %624
    %v627 = vsel %vm203, %v625, 0
    %629 = vmatprep.subr.bf16.mxu0 0
    %630 = vmatpush1.bf16.msra.mxu0 0
    %631 = vmatprep.subr.bf16.mxu0 0
    %632 = vmatpush1.bf16.msra.mxu0 0
    %633 = vmatprep.subr.bf16.mxu0 0
    %634 = vmatpush1.bf16.msra.mxu0 0
    %635 = vmatprep.subr.bf16.mxu0 0
    %636 = vmatpush1.bf16.msra.mxu0 0
    %637 = vmatprep.subr.bf16.mxu0 0
    %638 = vmatpush1.bf16.msra.mxu0 0
    %639 = vmatprep.subr.bf16.mxu0 0
    %640 = vmatpush1.bf16.msra.mxu0 0
    %641 = vmatprep.subr.bf16.mxu0 0
    %642 = vmatpush1.bf16.msra.mxu0 %v105
    %643 = vmatprep.subr.bf16.mxu0 0
    %644 = vmatpush1.bf16.msra.mxu0 %v104
    %645 = vmatprep.subr.bf16.mxu0 0
    %646 = vmatpush2.bf16.msra.mxu0 0
    %647 = vmatprep.subr.bf16.mxu0 0
    %648 = vmatpush2.bf16.msra.mxu0 0
    %649 = vmatprep.subr.bf16.mxu0 0
    %650 = vmatpush2.bf16.msra.mxu0 0
    %651 = vmatprep.subr.bf16.mxu0 0
    %652 = vmatpush2.bf16.msra.mxu0 0
    %653 = vmatprep.subr.bf16.mxu0 0
    %654 = vmatpush2.bf16.msra.mxu0 0
    %655 = vmatprep.subr.bf16.mxu0 0
    %656 = vmatpush2.bf16.msra.mxu0 0
    %657 = vmatprep.subr.bf16.mxu0 0
    %658 = vmatpush2.bf16.msra.mxu0 0
    %659 = vmatprep.subr.bf16.mxu0 0
    %660 = vmatpush2.bf16.msra.mxu0 0
    %661 = vmatprep.mubr.bf16.mxu0 0
    %662 = vmatmul.mubr.bf16.gmra.mxu0 %v627
    %v663 = vpop.f32.mrf.mxu0
    %v664 = vadd.f32 0.0, %v663
    %v665 = vpop.f32.mrf.mxu0
    %v666 = vpop.f32.mrf.mxu0
    %v667 = vpop.f32.mrf.mxu0
    %668 = vdwg.mxu0
    %v669 = vadd.f32 %v165, %v616
    %v670 = vadd.f32 %v618, %v125
    %v671 = vadd.f32 %v670, %v664
    %v672 = vmul.f32 %v669, %v132
    %v673 = vtanh.pop %v672
    %v674 = vmul.f32 %v673, %v132
    %v675 = vadd.f32 %v674, %v133
    %v676 = vmul.f32 %v675, %v546
    %678 = vrot.lane.b32.xlu0 %v675, 64
    %v679 = vpop.permute.xlu0 %678
    %v681 = vmul.f32 %v675, %v679
    %683 = vrot.lane.b32.xlu0 %v681, 32
    %v684 = vpop.permute.xlu0 %683
    %v686 = vadd.f32 %v676, %v684
    %v687 = vtanh.pop %v686
    %689 = vrot.lane.b32.xlu0 %v687, 64
    %v690 = vpop.permute.xlu0 %689
    %v692 = vmul.f32 %v675, %v690
    %v693 = vmul.f32 %v671, %v132
    %v694 = vtanh.pop %v693
    %v695 = vmul.f32 %v694, %v132
    %v696 = vadd.f32 %v695, %v133
    %v697 = vmul.f32 %v696, %v567
    %699 = vrot.lane.b32.xlu0 %v696, 64
    %v700 = vpop.permute.xlu0 %699
    %v702 = vmul.f32 %v696, %v700
    %704 = vrot.lane.b32.xlu0 %v702, 32
    %v705 = vpop.permute.xlu0 %704
    %v707 = vadd.f32 %v697, %v705
    %v708 = vtanh.pop %v707
    %710 = vrot.lane.b32.xlu0 %v708, 64
    %v711 = vpop.permute.xlu0 %710
    %v713 = vmul.f32 %v696, %v711
    %v714 = vpack.c.bf16 %v692, %v692
    %716 = vrot.lane.b32.xlu0 %v714, 32
    %v717 = vpop.permute.xlu0 %716
    %v719 = vsel %vm203, %v717, 0
    %721 = vmatprep.subr.bf16.mxu0 0
    %722 = vmatpush1.bf16.msra.mxu0 0
    %723 = vmatprep.subr.bf16.mxu0 0
    %724 = vmatpush1.bf16.msra.mxu0 0
    %725 = vmatprep.subr.bf16.mxu0 0
    %726 = vmatpush1.bf16.msra.mxu0 0
    %727 = vmatprep.subr.bf16.mxu0 0
    %728 = vmatpush1.bf16.msra.mxu0 0
    %729 = vmatprep.subr.bf16.mxu0 0
    %730 = vmatpush1.bf16.msra.mxu0 0
    %731 = vmatprep.subr.bf16.mxu0 0
    %732 = vmatpush1.bf16.msra.mxu0 0
    %733 = vmatprep.subr.bf16.mxu0 %v99
    %734 = vmatpush1.bf16.msra.mxu0 %v98
    %735 = vmatprep.subr.bf16.mxu0 %v97
    %736 = vmatpush1.bf16.msra.mxu0 %v96
    %737 = vmatprep.subr.bf16.mxu0 0
    %738 = vmatpush2.bf16.msra.mxu0 0
    %739 = vmatprep.subr.bf16.mxu0 0
    %740 = vmatpush2.bf16.msra.mxu0 0
    %741 = vmatprep.subr.bf16.mxu0 0
    %742 = vmatpush2.bf16.msra.mxu0 0
    %743 = vmatprep.subr.bf16.mxu0 0
    %744 = vmatpush2.bf16.msra.mxu0 0
    %745 = vmatprep.subr.bf16.mxu0 0
    %746 = vmatpush2.bf16.msra.mxu0 0
    %747 = vmatprep.subr.bf16.mxu0 0
    %748 = vmatpush2.bf16.msra.mxu0 0
    %749 = vmatprep.subr.bf16.mxu0 0
    %750 = vmatpush2.bf16.msra.mxu0 0
    %751 = vmatprep.subr.bf16.mxu0 0
    %752 = vmatpush2.bf16.msra.mxu0 0
    %753 = vmatprep.mubr.bf16.mxu0 0
    %754 = vmatmul.mubr.bf16.gmra.mxu0 %v719
    %v755 = vpop.f32.mrf.mxu0
    %v756 = vadd.f32 0.0, %v755
    %v757 = vpop.f32.mrf.mxu0
    %v758 = vadd.f32 0.0, %v757
    %v759 = vpop.f32.mrf.mxu0
    %v760 = vpop.f32.mrf.mxu0
    %761 = vdwg.mxu0
    %v762 = vpack.c.bf16 %v713, %v713
    %764 = vrot.lane.b32.xlu0 %v762, 32
    %v765 = vpop.permute.xlu0 %764
    %v767 = vsel %vm203, %v765, 0
    %769 = vmatprep.subr.bf16.mxu0 0
    %770 = vmatpush1.bf16.msra.mxu0 0
    %771 = vmatprep.subr.bf16.mxu0 0
    %772 = vmatpush1.bf16.msra.mxu0 0
    %773 = vmatprep.subr.bf16.mxu0 0
    %774 = vmatpush1.bf16.msra.mxu0 0
    %775 = vmatprep.subr.bf16.mxu0 0
    %776 = vmatpush1.bf16.msra.mxu0 0
    %777 = vmatprep.subr.bf16.mxu0 0
    %778 = vmatpush1.bf16.msra.mxu0 0
    %779 = vmatprep.subr.bf16.mxu0 0
    %780 = vmatpush1.bf16.msra.mxu0 0
    %781 = vmatprep.subr.bf16.mxu0 0
    %782 = vmatpush1.bf16.msra.mxu0 %v105
    %783 = vmatprep.subr.bf16.mxu0 0
    %784 = vmatpush1.bf16.msra.mxu0 %v104
    %785 = vmatprep.subr.bf16.mxu0 0
    %786 = vmatpush2.bf16.msra.mxu0 0
    %787 = vmatprep.subr.bf16.mxu0 0
    %788 = vmatpush2.bf16.msra.mxu0 0
    %789 = vmatprep.subr.bf16.mxu0 0
    %790 = vmatpush2.bf16.msra.mxu0 0
    %791 = vmatprep.subr.bf16.mxu0 0
    %792 = vmatpush2.bf16.msra.mxu0 0
    %793 = vmatprep.subr.bf16.mxu0 0
    %794 = vmatpush2.bf16.msra.mxu0 0
    %795 = vmatprep.subr.bf16.mxu0 0
    %796 = vmatpush2.bf16.msra.mxu0 0
    %797 = vmatprep.subr.bf16.mxu0 0
    %798 = vmatpush2.bf16.msra.mxu0 0
    %799 = vmatprep.subr.bf16.mxu0 0
    %800 = vmatpush2.bf16.msra.mxu0 0
    %801 = vmatprep.mubr.bf16.mxu0 0
    %802 = vmatmul.mubr.bf16.gmra.mxu0 %v767
    %v803 = vpop.f32.mrf.mxu0
    %v804 = vadd.f32 0.0, %v803
    %v805 = vpop.f32.mrf.mxu0
    %v806 = vpop.f32.mrf.mxu0
    %v807 = vpop.f32.mrf.mxu0
    %808 = vdwg.mxu0
    %v809 = vadd.f32 %v171, %v756
    %v810 = vadd.f32 %v758, %v125
    %v811 = vadd.f32 %v810, %v804
    %v812 = vmul.f32 %v809, %v132
    %v813 = vtanh.pop %v812
    %v814 = vmul.f32 %v813, %v132
    %v815 = vadd.f32 %v814, %v133
    %v816 = vmul.f32 %v815, %v686
    %818 = vrot.lane.b32.xlu0 %v815, 64
    %v819 = vpop.permute.xlu0 %818
    %v821 = vmul.f32 %v815, %v819
    %823 = vrot.lane.b32.xlu0 %v821, 32
    %v824 = vpop.permute.xlu0 %823
    %v826 = vadd.f32 %v816, %v824
    %v827 = vtanh.pop %v826
    %829 = vrot.lane.b32.xlu0 %v827, 64
    %v830 = vpop.permute.xlu0 %829
    %v832 = vmul.f32 %v815, %v830
    %v833 = vmul.f32 %v811, %v132
    %v834 = vtanh.pop %v833
    %v835 = vmul.f32 %v834, %v132
    %v836 = vadd.f32 %v835, %v133
    %v837 = vmul.f32 %v836, %v707
    %839 = vrot.lane.b32.xlu0 %v836, 64
    %v840 = vpop.permute.xlu0 %839
    %v842 = vmul.f32 %v836, %v840
    %844 = vrot.lane.b32.xlu0 %v842, 32
    %v845 = vpop.permute.xlu0 %844
    %v847 = vadd.f32 %v837, %v845
    %v848 = vtanh.pop %v847
    %850 = vrot.lane.b32.xlu0 %v848, 64
    %v851 = vpop.permute.xlu0 %850
    %v853 = vmul.f32 %v836, %v851
    %v854 = vpack.c.bf16 %v832, %v832
    %856 = vrot.lane.b32.xlu0 %v854, 32
    %v857 = vpop.permute.xlu0 %856
    %v859 = vsel %vm203, %v857, 0
    %861 = vmatprep.subr.bf16.mxu0 0
    %862 = vmatpush1.bf16.msra.mxu0 0
    %863 = vmatprep.subr.bf16.mxu0 0
    %864 = vmatpush1.bf16.msra.mxu0 0
    %865 = vmatprep.subr.bf16.mxu0 0
    %866 = vmatpush1.bf16.msra.mxu0 0
    %867 = vmatprep.subr.bf16.mxu0 0
    %868 = vmatpush1.bf16.msra.mxu0 0
    %869 = vmatprep.subr.bf16.mxu0 0
    %870 = vmatpush1.bf16.msra.mxu0 0
    %871 = vmatprep.subr.bf16.mxu0 0
    %872 = vmatpush1.bf16.msra.mxu0 0
    %873 = vmatprep.subr.bf16.mxu0 %v99
    %874 = vmatpush1.bf16.msra.mxu0 %v98
    %875 = vmatprep.subr.bf16.mxu0 %v97
    %876 = vmatpush1.bf16.msra.mxu0 %v96
    %877 = vmatprep.subr.bf16.mxu0 0
    %878 = vmatpush2.bf16.msra.mxu0 0
    %879 = vmatprep.subr.bf16.mxu0 0
    %880 = vmatpush2.bf16.msra.mxu0 0
    %881 = vmatprep.subr.bf16.mxu0 0
    %882 = vmatpush2.bf16.msra.mxu0 0
    %883 = vmatprep.subr.bf16.mxu0 0
    %884 = vmatpush2.bf16.msra.mxu0 0
    %885 = vmatprep.subr.bf16.mxu0 0
    %886 = vmatpush2.bf16.msra.mxu0 0
    %887 = vmatprep.subr.bf16.mxu0 0
    %888 = vmatpush2.bf16.msra.mxu0 0
    %889 = vmatprep.subr.bf16.mxu0 0
    %890 = vmatpush2.bf16.msra.mxu0 0
    %891 = vmatprep.subr.bf16.mxu0 0
    %892 = vmatpush2.bf16.msra.mxu0 0
    %893 = vmatprep.mubr.bf16.mxu0 0
    %894 = vmatmul.mubr.bf16.gmra.mxu0 %v859
    %v895 = vpop.f32.mrf.mxu0
    %v896 = vadd.f32 0.0, %v895
    %v897 = vpop.f32.mrf.mxu0
    %v898 = vadd.f32 0.0, %v897
    %v899 = vpop.f32.mrf.mxu0
    %v900 = vpop.f32.mrf.mxu0
    %901 = vdwg.mxu0
    %v902 = vpack.c.bf16 %v853, %v853
    %904 = vrot.lane.b32.xlu0 %v902, 32
    %v905 = vpop.permute.xlu0 %904
    %v907 = vsel %vm203, %v905, 0
    %909 = vmatprep.subr.bf16.mxu0 0
    %910 = vmatpush1.bf16.msra.mxu0 0
    %911 = vmatprep.subr.bf16.mxu0 0
    %912 = vmatpush1.bf16.msra.mxu0 0
    %913 = vmatprep.subr.bf16.mxu0 0
    %914 = vmatpush1.bf16.msra.mxu0 0
    %915 = vmatprep.subr.bf16.mxu0 0
    %916 = vmatpush1.bf16.msra.mxu0 0
    %917 = vmatprep.subr.bf16.mxu0 0
    %918 = vmatpush1.bf16.msra.mxu0 0
    %919 = vmatprep.subr.bf16.mxu0 0
    %920 = vmatpush1.bf16.msra.mxu0 0
    %921 = vmatprep.subr.bf16.mxu0 0
    %922 = vmatpush1.bf16.msra.mxu0 %v105
    %923 = vmatprep.subr.bf16.mxu0 0
    %924 = vmatpush1.bf16.msra.mxu0 %v104
    %925 = vmatprep.subr.bf16.mxu0 0
    %926 = vmatpush2.bf16.msra.mxu0 0
    %927 = vmatprep.subr.bf16.mxu0 0
    %928 = vmatpush2.bf16.msra.mxu0 0
    %929 = vmatprep.subr.bf16.mxu0 0
    %930 = vmatpush2.bf16.msra.mxu0 0
    %931 = vmatprep.subr.bf16.mxu0 0
    %932 = vmatpush2.bf16.msra.mxu0 0
    %933 = vmatprep.subr.bf16.mxu0 0
    %934 = vmatpush2.bf16.msra.mxu0 0
    %935 = vmatprep.subr.bf16.mxu0 0
    %936 = vmatpush2.bf16.msra.mxu0 0
    %937 = vmatprep.subr.bf16.mxu0 0
    %938 = vmatpush2.bf16.msra.mxu0 0
    %939 = vmatprep.subr.bf16.mxu0 0
    %940 = vmatpush2.bf16.msra.mxu0 0
    %941 = vmatprep.mubr.bf16.mxu0 0
    %942 = vmatmul.mubr.bf16.gmra.mxu0 %v907
    %v943 = vpop.f32.mrf.mxu0
    %v944 = vadd.f32 0.0, %v943
    %v945 = vpop.f32.mrf.mxu0
    %v946 = vpop.f32.mrf.mxu0
    %v947 = vpop.f32.mrf.mxu0
    %948 = vdwg.mxu0
    %v949 = vadd.f32 %v177, %v896
    %v950 = vadd.f32 %v898, %v125
    %v951 = vadd.f32 %v950, %v944
    %v952 = vmul.f32 %v949, %v132
    %v953 = vtanh.pop %v952
    %v954 = vmul.f32 %v953, %v132
    %v955 = vadd.f32 %v954, %v133
    %v956 = vmul.f32 %v955, %v826
    %958 = vrot.lane.b32.xlu0 %v955, 64
    %v959 = vpop.permute.xlu0 %958
    %v961 = vmul.f32 %v955, %v959
    %963 = vrot.lane.b32.xlu0 %v961, 32
    %v964 = vpop.permute.xlu0 %963
    %v966 = vadd.f32 %v956, %v964
    %v967 = vtanh.pop %v966
    %969 = vrot.lane.b32.xlu0 %v967, 64
    %v970 = vpop.permute.xlu0 %969
    %v972 = vmul.f32 %v955, %v970
    %v973 = vmul.f32 %v951, %v132
    %v974 = vtanh.pop %v973
    %v975 = vmul.f32 %v974, %v132
    %v976 = vadd.f32 %v975, %v133
    %v977 = vmul.f32 %v976, %v847
    %979 = vrot.lane.b32.xlu0 %v976, 64
    %v980 = vpop.permute.xlu0 %979
    %v982 = vmul.f32 %v976, %v980
    %984 = vrot.lane.b32.xlu0 %v982, 32
    %v985 = vpop.permute.xlu0 %984
    %v987 = vadd.f32 %v977, %v985
    %v988 = vtanh.pop %v987
    %990 = vrot.lane.b32.xlu0 %v988, 64
    %v991 = vpop.permute.xlu0 %990
    %v993 = vmul.f32 %v976, %v991
    %v994 = vpack.c.bf16 %v972, %v972
    %996 = vrot.lane.b32.xlu0 %v994, 32
    %v997 = vpop.permute.xlu0 %996
    %v999 = vsel %vm203, %v997, 0
    %1001 = vmatprep.subr.bf16.mxu0 0
    %1002 = vmatpush1.bf16.msra.mxu0 0
    %1003 = vmatprep.subr.bf16.mxu0 0
    %1004 = vmatpush1.bf16.msra.mxu0 0
    %1005 = vmatprep.subr.bf16.mxu0 0
    %1006 = vmatpush1.bf16.msra.mxu0 0
    %1007 = vmatprep.subr.bf16.mxu0 0
    %1008 = vmatpush1.bf16.msra.mxu0 0
    %1009 = vmatprep.subr.bf16.mxu0 0
    %1010 = vmatpush1.bf16.msra.mxu0 0
    %1011 = vmatprep.subr.bf16.mxu0 0
    %1012 = vmatpush1.bf16.msra.mxu0 0
    %1013 = vmatprep.subr.bf16.mxu0 %v99
    %1014 = vmatpush1.bf16.msra.mxu0 %v98
    %1015 = vmatprep.subr.bf16.mxu0 %v97
    %1016 = vmatpush1.bf16.msra.mxu0 %v96
    %1017 = vmatprep.subr.bf16.mxu0 0
    %1018 = vmatpush2.bf16.msra.mxu0 0
    %1019 = vmatprep.subr.bf16.mxu0 0
    %1020 = vmatpush2.bf16.msra.mxu0 0
    %1021 = vmatprep.subr.bf16.mxu0 0
    %1022 = vmatpush2.bf16.msra.mxu0 0
    %1023 = vmatprep.subr.bf16.mxu0 0
    %1024 = vmatpush2.bf16.msra.mxu0 0
    %1025 = vmatprep.subr.bf16.mxu0 0
    %1026 = vmatpush2.bf16.msra.mxu0 0
    %1027 = vmatprep.subr.bf16.mxu0 0
    %1028 = vmatpush2.bf16.msra.mxu0 0
    %1029 = vmatprep.subr.bf16.mxu0 0
    %1030 = vmatpush2.bf16.msra.mxu0 0
    %1031 = vmatprep.subr.bf16.mxu0 0
    %1032 = vmatpush2.bf16.msra.mxu0 0
    %1033 = vmatprep.mubr.bf16.mxu0 0
    %1034 = vmatmul.mubr.bf16.gmra.mxu0 %v999
    %v1035 = vpop.f32.mrf.mxu0
    %v1036 = vadd.f32 0.0, %v1035
    %v1037 = vpop.f32.mrf.mxu0
    %v1038 = vadd.f32 0.0, %v1037
    %v1039 = vpop.f32.mrf.mxu0
    %v1040 = vpop.f32.mrf.mxu0
    %1041 = vdwg.mxu0
    %v1042 = vpack.c.bf16 %v993, %v993
    %1044 = vrot.lane.b32.xlu0 %v1042, 32
    %v1045 = vpop.permute.xlu0 %1044
    %v1047 = vsel %vm203, %v1045, 0
    %1049 = vmatprep.subr.bf16.mxu0 0
    %1050 = vmatpush1.bf16.msra.mxu0 0
    %1051 = vmatprep.subr.bf16.mxu0 0
    %1052 = vmatpush1.bf16.msra.mxu0 0
    %1053 = vmatprep.subr.bf16.mxu0 0
    %1054 = vmatpush1.bf16.msra.mxu0 0
    %1055 = vmatprep.subr.bf16.mxu0 0
    %1056 = vmatpush1.bf16.msra.mxu0 0
    %1057 = vmatprep.subr.bf16.mxu0 0
    %1058 = vmatpush1.bf16.msra.mxu0 0
    %1059 = vmatprep.subr.bf16.mxu0 0
    %1060 = vmatpush1.bf16.msra.mxu0 0
    %1061 = vmatprep.subr.bf16.mxu0 0
    %1062 = vmatpush1.bf16.msra.mxu0 %v105
    %1063 = vmatprep.subr.bf16.mxu0 0
    %1064 = vmatpush1.bf16.msra.mxu0 %v104
    %1065 = vmatprep.subr.bf16.mxu0 0
    %1066 = vmatpush2.bf16.msra.mxu0 0
    %1067 = vmatprep.subr.bf16.mxu0 0
    %1068 = vmatpush2.bf16.msra.mxu0 0
    %1069 = vmatprep.subr.bf16.mxu0 0
    %1070 = vmatpush2.bf16.msra.mxu0 0
    %1071 = vmatprep.subr.bf16.mxu0 0
    %1072 = vmatpush2.bf16.msra.mxu0 0
    %1073 = vmatprep.subr.bf16.mxu0 0
    %1074 = vmatpush2.bf16.msra.mxu0 0
    %1075 = vmatprep.subr.bf16.mxu0 0
    %1076 = vmatpush2.bf16.msra.mxu0 0
    %1077 = vmatprep.subr.bf16.mxu0 0
    %1078 = vmatpush2.bf16.msra.mxu0 0
    %1079 = vmatprep.subr.bf16.mxu0 0
    %1080 = vmatpush2.bf16.msra.mxu0 0
    %1081 = vmatprep.mubr.bf16.mxu0 0
    %1082 = vmatmul.mubr.bf16.gmra.mxu0 %v1047
    %v1083 = vpop.f32.mrf.mxu0
    %v1084 = vadd.f32 0.0, %v1083
    %v1085 = vpop.f32.mrf.mxu0
    %v1086 = vpop.f32.mrf.mxu0
    %v1087 = vpop.f32.mrf.mxu0
    %1088 = vdwg.mxu0
    %v1089 = vadd.f32 %v183, %v1036
    %v1090 = vadd.f32 %v1038, %v125
    %v1091 = vadd.f32 %v1090, %v1084
    %v1092 = vmul.f32 %v1089, %v132
    %v1093 = vtanh.pop %v1092
    %v1094 = vmul.f32 %v1093, %v132
    %v1095 = vadd.f32 %v1094, %v133
    %v1096 = vmul.f32 %v1095, %v966
    %1098 = vrot.lane.b32.xlu0 %v1095, 64
    %v1099 = vpop.permute.xlu0 %1098
    %v1101 = vmul.f32 %v1095, %v1099
    %1103 = vrot.lane.b32.xlu0 %v1101, 32
    %v1104 = vpop.permute.xlu0 %1103
    %v1106 = vadd.f32 %v1096, %v1104
    %v1107 = vtanh.pop %v1106
    %1109 = vrot.lane.b32.xlu0 %v1107, 64
    %v1110 = vpop.permute.xlu0 %1109
    %v1112 = vmul.f32 %v1095, %v1110
    %v1113 = vmul.f32 %v1091, %v132
    %v1114 = vtanh.pop %v1113
    %v1115 = vmul.f32 %v1114, %v132
    %v1116 = vadd.f32 %v1115, %v133
    %v1117 = vmul.f32 %v1116, %v987
    %1119 = vrot.lane.b32.xlu0 %v1116, 64
    %v1120 = vpop.permute.xlu0 %1119
    %v1122 = vmul.f32 %v1116, %v1120
    %1124 = vrot.lane.b32.xlu0 %v1122, 32
    %v1125 = vpop.permute.xlu0 %1124
    %v1127 = vadd.f32 %v1117, %v1125
    %v1128 = vtanh.pop %v1127
    %1130 = vrot.lane.b32.xlu0 %v1128, 64
    %v1131 = vpop.permute.xlu0 %1130
    %v1133 = vmul.f32 %v1116, %v1131
    %v1134 = vpack.c.bf16 %v1112, %v1112
    %1136 = vrot.lane.b32.xlu0 %v1134, 32
    %v1137 = vpop.permute.xlu0 %1136
    %v1139 = vsel %vm203, %v1137, 0
    %1141 = vmatprep.subr.bf16.mxu0 0
    %1142 = vmatpush1.bf16.msra.mxu0 0
    %1143 = vmatprep.subr.bf16.mxu0 0
    %1144 = vmatpush1.bf16.msra.mxu0 0
    %1145 = vmatprep.subr.bf16.mxu0 0
    %1146 = vmatpush1.bf16.msra.mxu0 0
    %1147 = vmatprep.subr.bf16.mxu0 0
    %1148 = vmatpush1.bf16.msra.mxu0 0
    %1149 = vmatprep.subr.bf16.mxu0 0
    %1150 = vmatpush1.bf16.msra.mxu0 0
    %1151 = vmatprep.subr.bf16.mxu0 0
    %1152 = vmatpush1.bf16.msra.mxu0 0
    %1153 = vmatprep.subr.bf16.mxu0 0
    %1154 = vmatpush1.bf16.msra.mxu0 %v99
    %1155 = vmatprep.subr.bf16.mxu0 0
    %1156 = vmatpush1.bf16.msra.mxu0 %v97
    %1157 = vmatprep.subr.bf16.mxu0 0
    %1158 = vmatpush2.bf16.msra.mxu0 0
    %1159 = vmatprep.subr.bf16.mxu0 0
    %1160 = vmatpush2.bf16.msra.mxu0 0
    %1161 = vmatprep.subr.bf16.mxu0 0
    %1162 = vmatpush2.bf16.msra.mxu0 0
    %1163 = vmatprep.subr.bf16.mxu0 0
    %1164 = vmatpush2.bf16.msra.mxu0 0
    %1165 = vmatprep.subr.bf16.mxu0 0
    %1166 = vmatpush2.bf16.msra.mxu0 0
    %1167 = vmatprep.subr.bf16.mxu0 0
    %1168 = vmatpush2.bf16.msra.mxu0 0
    %1169 = vmatprep.subr.bf16.mxu0 0
    %1170 = vmatpush2.bf16.msra.mxu0 0
    %1171 = vmatprep.subr.bf16.mxu0 0
    %1172 = vmatpush2.bf16.msra.mxu0 0
    %1173 = vmatprep.mubr.bf16.mxu0 0
    %1174 = vmatmul.mubr.bf16.gmra.mxu0 %v1139
    %v1175 = vpop.f32.mrf.mxu0
    %v1176 = vadd.f32 %v125, %v1175
    %v1177 = vpop.f32.mrf.mxu0
    %v1178 = vpop.f32.mrf.mxu0
    %v1179 = vpop.f32.mrf.mxu0
    %1180 = vdwg.mxu0
    %v1181 = vpack.c.bf16 %v1133, %v1133
    %1183 = vrot.lane.b32.xlu0 %v1181, 32
    %v1184 = vpop.permute.xlu0 %1183
    %v1186 = vsel %vm203, %v1184, 0
    %1188 = vmatprep.subr.bf16.mxu0 0
    %1189 = vmatpush1.bf16.msra.mxu0 0
    %1190 = vmatprep.subr.bf16.mxu0 0
    %1191 = vmatpush1.bf16.msra.mxu0 0
    %1192 = vmatprep.subr.bf16.mxu0 0
    %1193 = vmatpush1.bf16.msra.mxu0 0
    %1194 = vmatprep.subr.bf16.mxu0 0
    %1195 = vmatpush1.bf16.msra.mxu0 0
    %1196 = vmatprep.subr.bf16.mxu0 0
    %1197 = vmatpush1.bf16.msra.mxu0 0
    %1198 = vmatprep.subr.bf16.mxu0 0
    %1199 = vmatpush1.bf16.msra.mxu0 0
    %1200 = vmatprep.subr.bf16.mxu0 0
    %1201 = vmatpush1.bf16.msra.mxu0 %v105
    %1202 = vmatprep.subr.bf16.mxu0 0
    %1203 = vmatpush1.bf16.msra.mxu0 %v104
    %1204 = vmatprep.subr.bf16.mxu0 0
    %1205 = vmatpush2.bf16.msra.mxu0 0
    %1206 = vmatprep.subr.bf16.mxu0 0
    %1207 = vmatpush2.bf16.msra.mxu0 0
    %1208 = vmatprep.subr.bf16.mxu0 0
    %1209 = vmatpush2.bf16.msra.mxu0 0
    %1210 = vmatprep.subr.bf16.mxu0 0
    %1211 = vmatpush2.bf16.msra.mxu0 0
    %1212 = vmatprep.subr.bf16.mxu0 0
    %1213 = vmatpush2.bf16.msra.mxu0 0
    %1214 = vmatprep.subr.bf16.mxu0 0
    %1215 = vmatpush2.bf16.msra.mxu0 0
    %1216 = vmatprep.subr.bf16.mxu0 0
    %1217 = vmatpush2.bf16.msra.mxu0 0
    %1218 = vmatprep.subr.bf16.mxu0 0
    %1219 = vmatpush2.bf16.msra.mxu0 0
    %1220 = vmatprep.mubr.bf16.mxu0 0
    %1221 = vmatmul.mubr.bf16.gmra.mxu0 %v1186
    %v1222 = vpop.f32.mrf.mxu0
    %v1223 = vadd.f32 0.0, %v1222
    %v1224 = vpop.f32.mrf.mxu0
    %v1225 = vpop.f32.mrf.mxu0
    %v1226 = vpop.f32.mrf.mxu0
    %1227 = vdwg.mxu0
    %v1228 = vadd.f32 %v1176, %v1223
    %v1229 = vmul.f32 %v1228, %v132
    %v1230 = vtanh.pop %v1229
    %v1231 = vmul.f32 %v1230, %v132
    %v1232 = vadd.f32 %v1231, %v133
    %v1233 = vmul.f32 %v1232, %v1127
    %1235 = vrot.lane.b32.xlu0 %v1232, 64
    %v1236 = vpop.permute.xlu0 %1235
    %v1238 = vmul.f32 %v1232, %v1236
    %1240 = vrot.lane.b32.xlu0 %v1238, 32
    %v1241 = vpop.permute.xlu0 %1240
    %v1243 = vadd.f32 %v1233, %v1241
    %v1244 = vtanh.pop %v1243
    %1246 = vrot.lane.b32.xlu0 %v1244, 64
    %v1247 = vpop.permute.xlu0 %1246
    %v1249 = vmul.f32 %v1232, %v1247
    %v1250 = vld [vmem:[%s7] sm:$0x1]
    %v1252 = vlaneseq
    %v1253 = vshrl.u32 %v1252, 7
    %v1254 = vsub.s32 0, %v1253
    %v1255 = vrot.slane %v1250, %v1254
    %1256 = vrot.lane.b32.xlu0 %v1255, 96
    %v1257 = vpop.permute.xlu0 %1256
    %v1259 = vmul.f32 %v1249, %v1257
    %1261 = vrot.lane.b32.xlu0 %v1259, 32
    %v1262 = vpop.permute.xlu0 %1261
    %v1264 = vsel %vm203, %v1262, 0.0
    %1265 = vadd.xlane.f32.xlu0 %v1264
    %v1266 = vpop.xlane.xlu0 %1265
    %v1267 = vld [vmem:[#allocation2] sm:$0x1]
    %v1269 = vlaneseq
    %v1270 = vshrl.u32 %v1269, 7
    %v1271 = vsub.s32 0, %v1270
    %v1272 = vrot.slane %v1267, %v1271
    %v1274 = vadd.f32 %v1266, %v1272
    %vm1275 = vcmask 7168
    %1276 = vst.msk [vmem:[%s9] sm:$0xff] %vm1275, %v1274
    // Predicated region
    $region54: #{net_forward.1} parent=1 // pred_check
      _
    $region55: #{net_forward.1} parent=1 // pred_check_branch
      %1278 = sbr.rel (0) target = $region57
    $region56: #{net_forward.1} parent=1 // pred_region
      _
    $region57: #{net_forward.1} parent=1 // pred_fallthru
      _
    // Predicated region
    $region58: #{net_forward.1} parent=1 // pred_check
      _
    $region59: #{net_forward.1} parent=1 // pred_check_branch
      %1280 = sbr.rel (0) target = $region61
    $region60: #{net_forward.1} parent=1 // pred_region
      _
    $region61: #{net_forward.1} parent=1 // pred_fallthru
      _
    %1281 = vsyncpa [#allocation4], 1
    %1282 = vsyncpa [#allocation6], 1
    %1283 = vsyncpa [#allocation9], 1

</llo_original>
